<compile_context>
chip_gen: v7x
topology: tpu7x:2x2x1
jax: 0.10.0
libtpu: 0.0.40
codegen_flags: <defaults>
</compile_context>

<pallas_src>
import functools

import jax
import jax.numpy as jnp
import numpy as np
from jax.experimental import pallas as pl
from jax.experimental.pallas import tpu as pltpu

_LANE = 128
_HIGHEST = jax.lax.Precision.HIGHEST


def _vmem_capacity_bytes():
    """Physical VMEM per core, with a conservative (v7x-sized) fallback."""
    try:
        info = pltpu.get_tpu_info()
        cap = getattr(info, "vmem_capacity_bytes", None)
        if cap:
            return int(cap)
    except Exception:
        pass
    return 64 * 1024 * 1024


def _const_spec(shape, index_map, single_buffer):
    """BlockSpec for a grid-invariant weight block.

    When the weights are large (ResNet-scale C), single-buffer them: the
    pipeline never refetches a grid-invariant block, so the second buffer is
    wasted VMEM (double-buffered w1+w2 is ~C*P*16 bytes, a quarter of v7x's
    64 MiB at C=2048).  Falls back to the default spec if unsupported.
    """
    if single_buffer and hasattr(pl, "Buffered"):
        try:
            return pl.BlockSpec(shape, index_map, pipeline_mode=pl.Buffered(1))
        except TypeError:  # BlockSpec without pipeline_mode in this version
            pass
    return pl.BlockSpec(shape, index_map)


def _channel_add_mlp(ctx, w1, b1, ln_g, ln_b, w2, b2, gamma, ln_eps):
    """channel_add_conv: 1x1 conv (C->P) -> LayerNorm([P,1,1]) -> ReLU ->
    1x1 conv (P->C), scaled by gamma.  ctx is [C, 1]; returns [C, 1]."""
    h = jnp.dot(w1, ctx, preferred_element_type=jnp.float32,
                precision=_HIGHEST) + b1                       # [P, 1]
    mu = jnp.mean(h, axis=0, keepdims=True)
    var = jnp.mean(jnp.square(h - mu), axis=0, keepdims=True)
    h = (h - mu) * jax.lax.rsqrt(var + ln_eps)
    h = h * ln_g + ln_b
    h = jnp.maximum(h, 0.0)
    add = jnp.dot(w2, h, preferred_element_type=jnp.float32,
                  precision=_HIGHEST) + b2                     # [C, 1]
    return gamma * add


# ---------------------------------------------------------------------------
# Fused single-pass kernel (whole [C, HW] slab per batch element in VMEM).
# ---------------------------------------------------------------------------
def _fused_kernel(x_ref, wm_ref, bm_ref, w1_ref, b1_ref, lng_ref, lnb_ref,
                  w2_ref, b2_ref, gamma_ref, out_ref, *, ln_eps):
    x = x_ref[...]                                             # [C, HW]

    # conv_mask (1x1, C -> 1) on the MXU: logits = wm^T @ x -> [1, HW]
    logits = jax.lax.dot_general(
        wm_ref[...], x, (((0,), (0,)), ((), ())),
        preferred_element_type=jnp.float32, precision=_HIGHEST) + bm_ref[0]

    # Softmax-weighted pooling; the normalizer is folded into the [C,1] ctx.
    m = jnp.max(logits, axis=-1, keepdims=True)                # [1, 1]
    p = jnp.exp(logits - m)                                    # [1, HW]
    l = jnp.sum(p, axis=-1, keepdims=True)                     # [1, 1]
    ctx = jax.lax.dot_general(
        x, p, (((1,), (1,)), ((), ())),
        preferred_element_type=jnp.float32, precision=_HIGHEST) / l   # [C, 1]

    term = _channel_add_mlp(ctx, w1_ref[...], b1_ref[...], lng_ref[...],
                            lnb_ref[...], w2_ref[...], b2_ref[...],
                            gamma_ref[0], ln_eps)
    out_ref[...] = x + term


# ---------------------------------------------------------------------------
# Streaming path: online-softmax pooling over HW tiles, then broadcast add.
# ---------------------------------------------------------------------------
def _context_pool_kernel(x_ref, wm_ref, bm_ref, w1_ref, b1_ref, lng_ref,
                         lnb_ref, w2_ref, b2_ref, gamma_ref, term_ref,
                         m_sc, l_sc, acc_sc, *, hw, tile_hw, mask_tail,
                         ln_eps):
    t = pl.program_id(1)
    nt = pl.num_programs(1)

    @pl.when(t == 0)
    def _():
        m_sc[...] = jnp.full_like(m_sc, -jnp.inf)
        l_sc[...] = jnp.zeros_like(l_sc)
        acc_sc[...] = jnp.zeros_like(acc_sc)

    x = x_ref[...]                                             # [C, tile_hw]

    if mask_tail:
        # The edge tile's out-of-range lanes hold whatever was resident in
        # VMEM (possibly NaN/inf): zero x there so the MXU accumulation can
        # never pick it up, and force its logits to -inf so the softmax
        # weight is exactly zero.
        col = t * tile_hw + jax.lax.broadcasted_iota(jnp.int32, (1, tile_hw), 1)
        valid = col < hw
        x = jnp.where(valid, x, 0.0)

    # conv_mask (1x1, C -> 1) on the MXU: logits = wm^T @ x -> [1, tile_hw]
    logits = jax.lax.dot_general(
        wm_ref[...], x, (((0,), (0,)), ((), ())),
        preferred_element_type=jnp.float32, precision=_HIGHEST) + bm_ref[0]
    if mask_tail:
        logits = jnp.where(valid, logits, -jnp.inf)

    # Online-softmax (flash-style) streaming reduction over HW tiles.  The
    # cdiv grid guarantees every tile has >= 1 unmasked column, so m_new is
    # finite and exp(m_prev - m_new) is well defined.
    m_prev = m_sc[...]
    m_new = jnp.maximum(m_prev, jnp.max(logits, axis=-1, keepdims=True))   # [1,1]
    alpha = jnp.exp(m_prev - m_new)
    p = jnp.exp(logits - m_new)                                            # [1, tile_hw]
    l_sc[...] = alpha * l_sc[...] + jnp.sum(p, axis=-1, keepdims=True)
    # Weighted-sum update on the MXU: x @ p^T -> [C, 1]
    acc_sc[...] = alpha * acc_sc[...] + jax.lax.dot_general(
        x, p, (((1,), (1,)), ((), ())),
        preferred_element_type=jnp.float32, precision=_HIGHEST)
    m_sc[...] = m_new

    @pl.when(t == nt - 1)
    def _():
        # Exact divide: runs once per batch element, off the hot path.
        ctx = acc_sc[...] / l_sc[...]                                      # [C, 1]
        term_ref[...] = _channel_add_mlp(
            ctx, w1_ref[...], b1_ref[...], lng_ref[...], lnb_ref[...],
            w2_ref[...], b2_ref[...], gamma_ref[0], ln_eps)


def _broadcast_add_kernel(x_ref, term_ref, out_ref):
    # out[c, j] = x[c, j] + term[c].  The edge tile's out-of-range lanes are
    # masked by the pipeline writeback, so no in-kernel masking is needed.
    out_ref[...] = x_ref[...] + term_ref[...]


# ---------------------------------------------------------------------------
# Wrapper
# ---------------------------------------------------------------------------
def context_block_forward(x_nchw, params, *, max_tile_hw=None, ln_eps=1e-5):
    """ContextBlock forward (pooling_type='att', fusion=('channel_add',)).

    x_nchw: [B, C, H, W] float32.  Returns [B, C, H, W] float32.
    max_tile_hw: optional manual cap on the HW tile (testing / tuning); by
      default the tile is sized from the per-generation VMEM budget.
    """
    wm, bm, w1, b1, ln_g, ln_b, w2, b2, gamma = params
    B, C, H, W = x_nchw.shape
    HW = H * W

    # ---- generation-aware VMEM budget & tile sizing ------------------------
    cap = _vmem_capacity_bytes()
    # 128 MiB parts (v5e/v6e): budget ~96 MiB; 64 MiB parts (v7x): stay <=48.
    vmem_limit = (96 * 1024 * 1024 if cap >= 100 * 1024 * 1024
                  else 48 * 1024 * 1024)

    weight_bytes = 4 * int(wm.size + w1.size + b1.size + ln_g.size
                           + ln_b.size + w2.size + b2.size)
    single_buffer_w = weight_bytes >= (1 << 20)   # only worth it at big C*P
    # Budget for the streamed x/out tiles: weights counted double-buffered
    # (conservative in case single-buffering is unavailable) plus headroom
    # for compiler scratch and the tiny term / reduction state.
    x_budget = vmem_limit - 2 * weight_bytes - 2 * 1024 * 1024
    # 4 live [C, tile] f32 buffers bound the tile (x-in + out, double-buffered).
    tile_cap = max(_LANE, (x_budget // (16 * C)) // _LANE * _LANE)
    if max_tile_hw is not None:
        tile_cap = min(tile_cap, max(_LANE, (max_tile_hw // _LANE) * _LANE))

    xf = x_nchw.reshape(B, C, HW)       # contiguous reshape: no pad, no copy
    smem_spec = pl.BlockSpec(memory_space=pltpu.SMEM)

    # ---- fast path: one [C, HW] slab per batch element fits the budget -----
    if HW <= tile_cap:
        def wspec(a):
            return _const_spec(a.shape, lambda b: (0,) * a.ndim, single_buffer_w)

        out = pl.pallas_call(
            functools.partial(_fused_kernel, ln_eps=ln_eps),
            out_shape=jax.ShapeDtypeStruct((B, C, HW), jnp.float32),
            grid_spec=pltpu.PrefetchScalarGridSpec(
                num_scalar_prefetch=0,
                grid=(B,),
                in_specs=[
                    pl.BlockSpec((None, C, HW), lambda b: (b, 0, 0)),  # x slab
                    wspec(wm), smem_spec,                              # conv_mask w / b
                    wspec(w1), wspec(b1),                              # conv1x1 C -> P
                    wspec(ln_g), wspec(ln_b),                          # LayerNorm affine
                    wspec(w2), wspec(b2),                              # conv1x1 P -> C
                    smem_spec,                                         # gamma
                ],
                out_specs=pl.BlockSpec((None, C, HW), lambda b: (b, 0, 0)),
            ),
            compiler_params=pltpu.CompilerParams(
                dimension_semantics=("parallel",),
                vmem_limit_bytes=vmem_limit,
            ),
        )(xf, wm, bm, w1, b1, ln_g, ln_b, w2, b2, gamma)
        return out.reshape(B, C, H, W)

    # ---- general path: streaming reduction + broadcast residual add --------
    tile_hw = tile_cap
    num_tiles = pl.cdiv(HW, tile_hw)
    mask_tail = (HW % tile_hw) != 0

    def wspec(a):
        return _const_spec(a.shape, lambda b, t: (0,) * a.ndim, single_buffer_w)

    pool_kernel = functools.partial(
        _context_pool_kernel, hw=HW, tile_hw=tile_hw, mask_tail=mask_tail,
        ln_eps=ln_eps)

    term = pl.pallas_call(
        pool_kernel,
        out_shape=jax.ShapeDtypeStruct((B, C, 1), jnp.float32),
        grid_spec=pltpu.PrefetchScalarGridSpec(
            num_scalar_prefetch=0,
            grid=(B, num_tiles),
            in_specs=[
                pl.BlockSpec((None, C, tile_hw), lambda b, t: (b, 0, t)),  # x tile
                wspec(wm), smem_spec,
                wspec(w1), wspec(b1),
                wspec(ln_g), wspec(ln_b),
                wspec(w2), wspec(b2),
                smem_spec,
            ],
            out_specs=pl.BlockSpec((None, C, 1), lambda b, t: (b, 0, 0)),
            scratch_shapes=[
                pltpu.VMEM((1, 1), jnp.float32),   # running max   m
                pltpu.VMEM((1, 1), jnp.float32),   # running sum   l
                pltpu.VMEM((C, 1), jnp.float32),   # running weighted sum acc
            ],
        ),
        compiler_params=pltpu.CompilerParams(
            dimension_semantics=("parallel", "arbitrary"),
            vmem_limit_bytes=vmem_limit,
        ),
    )(xf, wm, bm, w1, b1, ln_g, ln_b, w2, b2, gamma)

    out = pl.pallas_call(
        _broadcast_add_kernel,
        out_shape=jax.ShapeDtypeStruct((B, C, HW), jnp.float32),
        grid_spec=pltpu.PrefetchScalarGridSpec(
            num_scalar_prefetch=0,
            grid=(B, num_tiles),
            in_specs=[
                pl.BlockSpec((None, C, tile_hw), lambda b, t: (b, 0, t)),
                pl.BlockSpec((None, C, 1), lambda b, t: (b, 0, 0)),
            ],
            out_specs=pl.BlockSpec((None, C, tile_hw), lambda b, t: (b, 0, t)),
        ),
        compiler_params=pltpu.CompilerParams(
            dimension_semantics=("parallel", "parallel"),
            vmem_limit_bytes=vmem_limit,
        ),
    )(xf, term)

    return out.reshape(B, C, H, W)


# ---------------------------------------------------------------------------
# Parameters, reference, tests
# ---------------------------------------------------------------------------
def make_params(key, C, planes):
    """Synthetic parameters matching ContextBlock(inplanes=C, ratio=planes/C).

    PyTorch zero-inits the last conv of channel_add_conv and gamma
    (last_zero_init); nonzero values are used here so the context branch
    actually contributes to the tested output.
    """
    ks = jax.random.split(key, 6)
    s = 0.1
    wm = jax.random.normal(ks[0], (C, 1), jnp.float32) * s        # conv_mask.weight [1,C,1,1]
    bm = jax.random.normal(ks[1], (1,), jnp.float32) * s          # conv_mask.bias
    w1 = jax.random.normal(ks[2], (planes, C), jnp.float32) * s   # channel_add_conv[0].weight
    b1 = jax.random.normal(ks[3], (planes, 1), jnp.float32) * s   # channel_add_conv[0].bias
    ln_g = jnp.ones((planes, 1), jnp.float32)                     # LayerNorm weight
    ln_b = jnp.zeros((planes, 1), jnp.float32)                    # LayerNorm bias
    w2 = jax.random.normal(ks[4], (C, planes), jnp.float32) * s   # channel_add_conv[3].weight
    b2 = jax.random.normal(ks[5], (C, 1), jnp.float32) * s        # channel_add_conv[3].bias
    gamma = jnp.full((1,), 0.5, jnp.float32)
    return (wm, bm, w1, b1, ln_g, ln_b, w2, b2, gamma)


def reference_forward(x_nchw, params, ln_eps=1e-5):
    """Plain-JAX reference mirroring the PyTorch ContextBlock forward."""
    wm, bm, w1, b1, ln_g, ln_b, w2, b2, gamma = params
    B, C, H, W = x_nchw.shape
    HW = H * W
    hi = jax.lax.Precision.HIGHEST
    xf = x_nchw.reshape(B, C, HW)
    logits = jnp.einsum("bcj,c->bj", xf, wm[:, 0], precision=hi) + bm[0]
    attn = jax.nn.softmax(logits, axis=-1)
    ctx = jnp.einsum("bcj,bj->bc", xf, attn, precision=hi)
    h = jnp.einsum("pc,bc->bp", w1, ctx, precision=hi) + b1[:, 0]
    mu = jnp.mean(h, axis=-1, keepdims=True)
    var = jnp.mean(jnp.square(h - mu), axis=-1, keepdims=True)
    h = (h - mu) * jax.lax.rsqrt(var + ln_eps)
    h = h * ln_g[:, 0] + ln_b[:, 0]
    h = jnp.maximum(h, 0.0)
    term = jnp.einsum("cp,bp->bc", w2, h, precision=hi) + b2[:, 0]
    out = xf + gamma[0] * term[:, :, None]
    return out.reshape(B, C, H, W)


def _check(out, ref, name):
    out_np, ref_np = np.asarray(out), np.asarray(ref)
    if not np.allclose(out_np, ref_np, rtol=2e-2, atol=2e-3):
        err = float(np.max(np.abs(out_np - ref_np)))
        raise AssertionError(f"{name}: Pallas output mismatch (max abs err {err})")


if __name__ == "__main__":
    key = jax.random.PRNGKey(0)
    k_x1, k_p1, k_x2, k_p2, k_x3, k_p3 = jax.random.split(key, 6)

    # Case 1: aligned HW (16*16 = 256) -> fused single-pass path.
    B, C, H, W = 2, 64, 16, 16
    params = make_params(k_p1, C, int(C * 0.25))
    x = jax.random.normal(k_x1, (B, C, H, W), jnp.float32)
    out = jax.block_until_ready(context_block_forward(x, params))
    _check(out, reference_forward(x, params), "fused aligned")
    assert out.shape == (B, C, H, W)

    # Case 2: non-128-aligned HW (7*9 = 63) -> fused path, partial lane store,
    # no padding copies in the wrapper.
    B2, C2, H2, W2 = 1, 32, 7, 9
    params2 = make_params(k_p2, C2, int(C2 * 0.25))
    x2 = jax.random.normal(k_x2, (B2, C2, H2, W2), jnp.float32)
    out2 = jax.block_until_ready(context_block_forward(x2, params2))
    _check(out2, reference_forward(x2, params2), "fused unaligned")
    assert out2.shape == (B2, C2, H2, W2)

    # Case 3: force the streaming two-pass path (tile 128, HW = 9*31 = 279 ->
    # 3 tiles with a partial edge tile) exercising online softmax + masking.
    B3, C3, H3, W3 = 2, 32, 9, 31
    params3 = make_params(k_p3, C3, int(C3 * 0.25))
    x3 = jax.random.normal(k_x3, (B3, C3, H3, W3), jnp.float32)
    out3 = jax.block_until_ready(
        context_block_forward(x3, params3, max_tile_hw=128))
    _check(out3, reference_forward(x3, params3), "streaming masked")
    assert out3.shape == (B3, C3, H3, W3)

    # Case 4: streaming path with an exact multi-tile split (256 = 2 * 128).
    out4 = jax.block_until_ready(
        context_block_forward(x, params, max_tile_hw=128))
    _check(out4, reference_forward(x, params), "streaming aligned")

    print("KERNEL_OK")
</pallas_src>

<mosaic_0001>
module attributes {stable_mosaic.version = 11 : i64} {
  func.func @_fused_kernel(%arg0: i32, %arg1: memref<1x64x256xf32, #tpu.memory_space<vmem>>, %arg2: memref<64x1xf32, #tpu.memory_space<vmem>>, %arg3: memref<1xf32, #tpu.memory_space<smem>>, %arg4: memref<16x64xf32, #tpu.memory_space<vmem>>, %arg5: memref<16x1xf32, #tpu.memory_space<vmem>>, %arg6: memref<16x1xf32, #tpu.memory_space<vmem>>, %arg7: memref<16x1xf32, #tpu.memory_space<vmem>>, %arg8: memref<64x16xf32, #tpu.memory_space<vmem>>, %arg9: memref<64x1xf32, #tpu.memory_space<vmem>>, %arg10: memref<1xf32, #tpu.memory_space<smem>>, %arg11: memref<1x64x256xf32, #tpu.memory_space<vmem>>) attributes {dimension_semantics = [#tpu.dimension_semantics<parallel>], iteration_bounds = array<i64: 2>, scalar_prefetch = 0 : i64, scratch_operands = 0 : i64, tpu.core_type = #tpu.core_type<tc>, window_params = [{transform_indices = @transform_0, window_bounds = array<i64: 1, 64, 256>}, {pipeline_mode = #tpu.pipeline_mode<synchronous>, transform_indices = @transform_1, window_bounds = array<i64: 64, 1>}, {transform_indices = @transform_2, window_bounds = array<i64: 1>}, {pipeline_mode = #tpu.pipeline_mode<synchronous>, transform_indices = @transform_3, window_bounds = array<i64: 16, 64>}, {pipeline_mode = #tpu.pipeline_mode<synchronous>, transform_indices = @transform_4, window_bounds = array<i64: 16, 1>}, {pipeline_mode = #tpu.pipeline_mode<synchronous>, transform_indices = @transform_5, window_bounds = array<i64: 16, 1>}, {pipeline_mode = #tpu.pipeline_mode<synchronous>, transform_indices = @transform_6, window_bounds = array<i64: 16, 1>}, {pipeline_mode = #tpu.pipeline_mode<synchronous>, transform_indices = @transform_7, window_bounds = array<i64: 64, 16>}, {pipeline_mode = #tpu.pipeline_mode<synchronous>, transform_indices = @transform_8, window_bounds = array<i64: 64, 1>}, {transform_indices = @transform_9, window_bounds = array<i64: 1>}, {transform_indices = @transform_10, window_bounds = array<i64: 1, 64, 256>}]} {
    %c0 = arith.constant 0 : index
    %c0_0 = arith.constant 0 : index
    %c0_1 = arith.constant 0 : index
    %0 = vector.load %arg1[%c0, %c0_0, %c0_1] : memref<1x64x256xf32, #tpu.memory_space<vmem>>, vector<1x64x256xf32>
    %1 = vector.shape_cast %0 : vector<1x64x256xf32> to vector<64x256xf32>
    %c0_2 = arith.constant 0 : index
    %c0_3 = arith.constant 0 : index
    %2 = vector.load %arg2[%c0_2, %c0_3] : memref<64x1xf32, #tpu.memory_space<vmem>>, vector<64x1xf32>
    %cst = arith.constant dense<0.000000e+00> : vector<1x256xf32>
    %3 = tpu.matmul %2, %1, %cst {dimension_numbers = #tpu.dot_dimension_numbers<[0], [0], [1], [1], [0, 1, 1, 1], [], []>, precision = #tpu.contract_precision<fp32>} : vector<64x1xf32>, vector<64x256xf32>, vector<1x256xf32> -> vector<1x256xf32>
    %c0_4 = arith.constant 0 : index
    %4 = memref.load %arg3[%c0_4] : memref<1xf32, #tpu.memory_space<smem>>
    %5 = vector.broadcast %4 : f32 to vector<1x256xf32>
    %6 = arith.addf %3, %5 : vector<1x256xf32>
    %cst_5 = arith.constant dense<0xFF800000> : vector<1xf32>
    %7 = vector.multi_reduction <maximumf>, %6, %cst_5 [1] : vector<1x256xf32> to vector<1xf32>
    %8 = vector.shape_cast %7 : vector<1xf32> to vector<1x1xf32>
    %9 = vector.broadcast %8 : vector<1x1xf32> to vector<1x256xf32>
    %10 = arith.subf %6, %9 : vector<1x256xf32>
    %11 = math.exp %10 : vector<1x256xf32>
    %cst_6 = arith.constant dense<0.000000e+00> : vector<1xf32>
    %12 = vector.multi_reduction <add>, %11, %cst_6 [1] : vector<1x256xf32> to vector<1xf32>
    %13 = vector.shape_cast %12 : vector<1xf32> to vector<1x1xf32>
    %cst_7 = arith.constant dense<0.000000e+00> : vector<64x1xf32>
    %14 = tpu.matmul %1, %11, %cst_7 {dimension_numbers = #tpu.dot_dimension_numbers<[1], [1], [0], [0], [0, 0, 1, 0], [], []>, precision = #tpu.contract_precision<fp32>} : vector<64x256xf32>, vector<1x256xf32>, vector<64x1xf32> -> vector<64x1xf32>
    %15 = vector.broadcast %13 : vector<1x1xf32> to vector<64x1xf32>
    %16 = arith.divf %14, %15 : vector<64x1xf32>
    %c0_8 = arith.constant 0 : index
    %c0_9 = arith.constant 0 : index
    %17 = vector.load %arg4[%c0_8, %c0_9] : memref<16x64xf32, #tpu.memory_space<vmem>>, vector<16x64xf32>
    %c0_10 = arith.constant 0 : index
    %c0_11 = arith.constant 0 : index
    %18 = vector.load %arg5[%c0_10, %c0_11] : memref<16x1xf32, #tpu.memory_space<vmem>>, vector<16x1xf32>
    %c0_12 = arith.constant 0 : index
    %c0_13 = arith.constant 0 : index
    %19 = vector.load %arg6[%c0_12, %c0_13] : memref<16x1xf32, #tpu.memory_space<vmem>>, vector<16x1xf32>
    %c0_14 = arith.constant 0 : index
    %c0_15 = arith.constant 0 : index
    %20 = vector.load %arg7[%c0_14, %c0_15] : memref<16x1xf32, #tpu.memory_space<vmem>>, vector<16x1xf32>
    %c0_16 = arith.constant 0 : index
    %c0_17 = arith.constant 0 : index
    %21 = vector.load %arg8[%c0_16, %c0_17] : memref<64x16xf32, #tpu.memory_space<vmem>>, vector<64x16xf32>
    %c0_18 = arith.constant 0 : index
    %c0_19 = arith.constant 0 : index
    %22 = vector.load %arg9[%c0_18, %c0_19] : memref<64x1xf32, #tpu.memory_space<vmem>>, vector<64x1xf32>
    %c0_20 = arith.constant 0 : index
    %23 = memref.load %arg10[%c0_20] : memref<1xf32, #tpu.memory_space<smem>>
    %cst_21 = arith.constant dense<0.000000e+00> : vector<16x1xf32>
    %24 = tpu.matmul %17, %16, %cst_21 {dimension_numbers = #tpu.dot_dimension_numbers<[1], [0], [0], [1], [0, 0, 1, 1], [], []>, precision = #tpu.contract_precision<fp32>} : vector<16x64xf32>, vector<64x1xf32>, vector<16x1xf32> -> vector<16x1xf32>
    %25 = arith.addf %24, %18 : vector<16x1xf32>
    %cst_22 = arith.constant dense<0.000000e+00> : vector<1xf32>
    %26 = vector.multi_reduction <add>, %25, %cst_22 [0] : vector<16x1xf32> to vector<1xf32>
    %27 = vector.shape_cast %26 : vector<1xf32> to vector<1x1xf32>
    %cst_23 = arith.constant 1.600000e+01 : f32
    %28 = vector.broadcast %cst_23 : f32 to vector<1x1xf32>
    %29 = arith.divf %27, %28 : vector<1x1xf32>
    %30 = vector.broadcast %29 : vector<1x1xf32> to vector<16x1xf32>
    %31 = arith.subf %25, %30 : vector<16x1xf32>
    %32 = arith.mulf %31, %31 : vector<16x1xf32>
    %cst_24 = arith.constant dense<0.000000e+00> : vector<1xf32>
    %33 = vector.multi_reduction <add>, %32, %cst_24 [0] : vector<16x1xf32> to vector<1xf32>
    %34 = vector.shape_cast %33 : vector<1xf32> to vector<1x1xf32>
    %cst_25 = arith.constant 1.600000e+01 : f32
    %35 = vector.broadcast %cst_25 : f32 to vector<1x1xf32>
    %36 = arith.divf %34, %35 : vector<1x1xf32>
    %37 = vector.broadcast %29 : vector<1x1xf32> to vector<16x1xf32>
    %38 = arith.subf %25, %37 : vector<16x1xf32>
    %cst_26 = arith.constant 9.99999974E-6 : f32
    %39 = vector.broadcast %cst_26 : f32 to vector<1x1xf32>
    %40 = arith.addf %36, %39 : vector<1x1xf32>
    %41 = math.rsqrt %40 : vector<1x1xf32>
    %42 = vector.broadcast %41 : vector<1x1xf32> to vector<16x1xf32>
    %43 = arith.mulf %38, %42 : vector<16x1xf32>
    %44 = arith.mulf %43, %19 : vector<16x1xf32>
    %45 = arith.addf %44, %20 : vector<16x1xf32>
    %cst_27 = arith.constant 0.000000e+00 : f32
    %46 = vector.broadcast %cst_27 : f32 to vector<16x1xf32>
    %47 = arith.maximumf %45, %46 : vector<16x1xf32>
    %cst_28 = arith.constant dense<0.000000e+00> : vector<64x1xf32>
    %48 = tpu.matmul %21, %47, %cst_28 {dimension_numbers = #tpu.dot_dimension_numbers<[1], [0], [0], [1], [0, 0, 1, 1], [], []>, precision = #tpu.contract_precision<fp32>} : vector<64x16xf32>, vector<16x1xf32>, vector<64x1xf32> -> vector<64x1xf32>
    %49 = arith.addf %48, %22 : vector<64x1xf32>
    %50 = vector.broadcast %23 : f32 to vector<64x1xf32>
    %51 = arith.mulf %50, %49 : vector<64x1xf32>
    %52 = vector.broadcast %51 : vector<64x1xf32> to vector<64x256xf32>
    %53 = arith.addf %1, %52 : vector<64x256xf32>
    %c0_29 = arith.constant 0 : index
    %c0_30 = arith.constant 0 : index
    %c0_31 = arith.constant 0 : index
    %54 = vector.load %arg11[%c0_29, %c0_30, %c0_31] : memref<1x64x256xf32, #tpu.memory_space<vmem>>, vector<1x64x256xf32>
    %55 = vector.shape_cast %54 : vector<1x64x256xf32> to vector<64x256xf32>
    %56 = vector.shape_cast %53 : vector<64x256xf32> to vector<1x64x256xf32>
    tpu.vector_store %arg11[%c0_29, %c0_30, %c0_31], %56 {strides = array<i32>} : memref<1x64x256xf32, #tpu.memory_space<vmem>>, vector<1x64x256xf32>,
    return
  }
  func.func @transform_0(%arg0: i32) -> (i32, i32, i32) {
    %c0_i32 = arith.constant 0 : i32
    %c0_i32_0 = arith.constant 0 : i32
    %c0_i32_1 = arith.constant 0 : i32
    return %arg0, %c0_i32, %c0_i32_0 : i32, i32, i32
  }
  func.func @transform_1(%arg0: i32) -> (i32, i32) {
    %c0_i32 = arith.constant 0 : i32
    %c0_i32_0 = arith.constant 0 : i32
    %c0_i32_1 = arith.constant 0 : i32
    return %c0_i32, %c0_i32_0 : i32, i32
  }
  func.func @transform_2(%arg0: i32) -> i32 {
    %c0_i32 = arith.constant 0 : i32
    %c0_i32_0 = arith.constant 0 : i32
    return %c0_i32 : i32
  }
  func.func @transform_3(%arg0: i32) -> (i32, i32) {
    %c0_i32 = arith.constant 0 : i32
    %c0_i32_0 = arith.constant 0 : i32
    %c0_i32_1 = arith.constant 0 : i32
    return %c0_i32, %c0_i32_0 : i32, i32
  }
  func.func @transform_4(%arg0: i32) -> (i32, i32) {
    %c0_i32 = arith.constant 0 : i32
    %c0_i32_0 = arith.constant 0 : i32
    %c0_i32_1 = arith.constant 0 : i32
    return %c0_i32, %c0_i32_0 : i32, i32
  }
  func.func @transform_5(%arg0: i32) -> (i32, i32) {
    %c0_i32 = arith.constant 0 : i32
    %c0_i32_0 = arith.constant 0 : i32
    %c0_i32_1 = arith.constant 0 : i32
    return %c0_i32, %c0_i32_0 : i32, i32
  }
  func.func @transform_6(%arg0: i32) -> (i32, i32) {
    %c0_i32 = arith.constant 0 : i32
    %c0_i32_0 = arith.constant 0 : i32
    %c0_i32_1 = arith.constant 0 : i32
    return %c0_i32, %c0_i32_0 : i32, i32
  }
  func.func @transform_7(%arg0: i32) -> (i32, i32) {
    %c0_i32 = arith.constant 0 : i32
    %c0_i32_0 = arith.constant 0 : i32
    %c0_i32_1 = arith.constant 0 : i32
    return %c0_i32, %c0_i32_0 : i32, i32
  }
  func.func @transform_8(%arg0: i32) -> (i32, i32) {
    %c0_i32 = arith.constant 0 : i32
    %c0_i32_0 = arith.constant 0 : i32
    %c0_i32_1 = arith.constant 0 : i32
    return %c0_i32, %c0_i32_0 : i32, i32
  }
  func.func @transform_9(%arg0: i32) -> i32 {
    %c0_i32 = arith.constant 0 : i32
    %c0_i32_0 = arith.constant 0 : i32
    return %c0_i32 : i32
  }
  func.func @transform_10(%arg0: i32) -> (i32, i32, i32) {
    %c0_i32 = arith.constant 0 : i32
    %c0_i32_0 = arith.constant 0 : i32
    %c0_i32_1 = arith.constant 0 : i32
    return %arg0, %c0_i32, %c0_i32_0 : i32, i32, i32
  }
}

</mosaic_0001>

<llo_original>
// kernel: tpu_custom_call.1
$region0: #{tpu_custom_call.1}
  #allocation0 [shape = 'u32[]', space=smem, size = 0x4, offset = 0x4, fixed_abs, tag = 'smem constant byte address 0x4 - core index']
  #allocation1 [shape = 'u32[144,128]{1,0:T(1,128)}', space=vmem, size = 0x12000, scoped, tag = 'internal scratch']
  #allocation2 [shape = 'f32[1]{0:T(128)S(6)}', space=smem, size = 0x200, scoped, tag = 'scoped memory for tpu_custom_call.1']
  #allocation3 [shape = 'f32[1]{0:T(128)S(6)}', space=smem, size = 0x200, scoped, tag = 'scoped memory for tpu_custom_call.1']
  %s0 = inlined_call_operand.vmem [shape: f32[2,64,256], index: 0, kind: input, shape index: {}]
  %s1 = inlined_call_operand.vmem [shape: f32[64,1], index: 1, kind: input, shape index: {}]
  %s2 = inlined_call_operand.<no memory space> [shape: f32[1], index: 2, kind: input, shape index: {}]
  %s3 = inlined_call_operand.hbm [shape: f32[16,64], index: 3, kind: input, shape index: {}]
  %s4 = inlined_call_operand.vmem [shape: f32[16,1], index: 4, kind: input, shape index: {}]
  %s5 = inlined_call_operand.vmem [shape: f32[16,1], index: 5, kind: input, shape index: {}]
  %s6 = inlined_call_operand.vmem [shape: f32[16,1], index: 6, kind: input, shape index: {}]
  %s7 = inlined_call_operand.vmem [shape: f32[64,16], index: 7, kind: input, shape index: {}]
  %s8 = inlined_call_operand.vmem [shape: f32[64,1], index: 8, kind: input, shape index: {}]
  %s9 = inlined_call_operand.<no memory space> [shape: f32[1], index: 9, kind: input, shape index: {}]
  %s10 = inlined_call_operand.hbm [shape: f32[2,64,256], index: 10, kind: output, shape index: {}]
  %s11 = sld [smem:[#allocation0]]
  $region77: #{tpu_custom_call.1} parent=0
    _
  %s13 = ssub.s32 1, %s11
  %s14 = scalar_select 0, %s13, %s11
  %15 = sst [smem:[#allocation2]] %s2
  %16 = sst [smem:[#allocation3]] %s9
  $region1: #{tpu_custom_call.1} parent=0
    #allocation4 [shape = 'u8[8192]{0}', space=vmem, size = 0x2000, scoped, tag = 'input window, operand 3, single buffered']
    #allocation5 [shape = 's32[2]{0}', space=sflag, size = 0x8, scoped, tag = 'scoped memory for tpu_custom_call.1']
    #allocation6 [shape = 's32[2]{0}', space=sflag, size = 0x8, scoped, tag = 'scoped memory for tpu_custom_call.1']
    #allocation7 [shape = 'u8[131072]{0}', space=vmem, size = 0x20000, scoped, tag = 'output window, operand 0']
    %17 = vsyncpa [#allocation5], 0
    %18 = vsyncpa [#allocation6], 0
    %s19 = scalar_lea.sflag [#allocation6], 1
    %20 = vsyncpa %s19, 0
    loop: start=0, step=1, limit=4
    $region2: #{tpu_custom_call.1} parent=1 // loop_pre_header
      _
    $region3: #{tpu_custom_call.1} parent=1 // loop_header
      %s22 = sphi 0, %s26
      %p23 = scmp.ge.s32.totalorder %s22, 4
      %s32 = sphi 0, %s34
      %s35 = sphi 0, %s32
      %s36 = sphi 0, %s35
      %s52 = sphi 0, %s36
      %s56 = sphi 0, %s56
      %s58 = sphi 0, %s56
      %s59 = sphi 0, %s58
      %s73 = sphi 0, %s59
      %s77 = sphi 0, %s77
      %s79 = sphi 0, %s77
      %s80 = sphi 0, %s79
      %s94 = sphi 0, %s80
      %s98 = sphi 0, %s98
      %s100 = sphi 0, %s98
      %s101 = sphi 0, %s100
      %s115 = sphi 0, %s101
      %s119 = sphi 0, %s119
      %s121 = sphi 0, %s119
      %s122 = sphi 0, %s121
      %s136 = sphi 0, %s122
      %s140 = sphi 0, %s140
      %s142 = sphi 0, %s140
      %s143 = sphi 0, %s142
      %s157 = sphi 0, %s143
      %s161 = sphi 0, %s161
      %s163 = sphi 0, %s161
      %s164 = sphi 0, %s163
      %s178 = sphi 0, %s164
      %s182 = sphi 0, %s182
      %s184 = sphi 0, %s182
      %s185 = sphi 0, %s184
      %s199 = sphi 0, %s185
      %s203 = sphi 0, %s203
      %s205 = sphi 0, %s203
      %s206 = sphi 0, %s205
      %s220 = sphi 0, %s206
      %s224 = sphi 0, %s224
      %s226 = sphi 0, %s224
      %s227 = sphi 0, %s226
      %s241 = sphi 0, %s227
      %s247 = sphi 0, %s249
      %s250 = sphi 0, %s247
      %s251 = sphi 0, %s250
      %s267 = sphi 0, %s251
    $region4: #{tpu_custom_call.1} parent=1 // loop_header_branch
      %25 = sbr.rel (%p23) target = $region8
    $region5: #{tpu_custom_call.1} parent=1 // loop_body
      %s27 = ssub.s32 %s22, 1
      %s28 = ssub.s32 %s22, 2
      %s29 = sadd.s32 %s22, 1
      %s30 = ssub.s32 %s22, %s29
      %p31 = scmp.eq.s32.totalorder %s30, 0
      %s33 = sadd.s32 %s32, 1
      %s34 = scalar_select %p31, %s32, %s33
      %p37 = pneg %p31
      %p38 = scmp.eq.s32.totalorder %s22, 1
      %p39 = por %p37, %p38
      %p40 = scmp.ne.s32.totalorder %s32, %s35
      %p41 = scmp.eq.s32.totalorder %s22, 0
      %p42 = por %p40, %p41
      %p43 = scmp.ne.s32.totalorder %s32, %s35
      %p44 = scmp.eq.s32.totalorder %s27, 1
      %p45 = por %p43, %p44
      %p46 = scmp.ne.s32.totalorder %s35, %s36
      %p47 = scmp.eq.s32.totalorder %s27, 0
      %p48 = por %p46, %p47
      %p49 = scmp.ne.s32.totalorder %s35, %s36
      %p50 = scmp.eq.s32.totalorder %s28, 1
      %p51 = por %p49, %p50
      %p53 = scmp.ne.s32.totalorder %s36, %s52
      %p54 = scmp.eq.s32.totalorder %s28, 0
      %p55 = por %p53, %p54
      %s57 = sadd.s32 %s56, 1
      %p60 = scmp.eq.s32.totalorder %s22, 1
      %p61 = scmp.ne.s32.totalorder %s56, %s58
      %p62 = scmp.eq.s32.totalorder %s22, 0
      %p63 = por %p61, %p62
      %p64 = scmp.ne.s32.totalorder %s56, %s58
      %p65 = scmp.eq.s32.totalorder %s27, 1
      %p66 = por %p64, %p65
      %p67 = scmp.ne.s32.totalorder %s58, %s59
      %p68 = scmp.eq.s32.totalorder %s27, 0
      %p69 = por %p67, %p68
      %p70 = scmp.ne.s32.totalorder %s58, %s59
      %p71 = scmp.eq.s32.totalorder %s28, 1
      %p72 = por %p70, %p71
      %p74 = scmp.ne.s32.totalorder %s59, %s73
      %p75 = scmp.eq.s32.totalorder %s28, 0
      %p76 = por %p74, %p75
      %s78 = sadd.s32 %s77, 1
      %p81 = scmp.eq.s32.totalorder %s22, 1
      %p82 = scmp.ne.s32.totalorder %s77, %s79
      %p83 = scmp.eq.s32.totalorder %s22, 0
      %p84 = por %p82, %p83
      %p85 = scmp.ne.s32.totalorder %s77, %s79
      %p86 = scmp.eq.s32.totalorder %s27, 1
      %p87 = por %p85, %p86
      %p88 = scmp.ne.s32.totalorder %s79, %s80
      %p89 = scmp.eq.s32.totalorder %s27, 0
      %p90 = por %p88, %p89
      %p91 = scmp.ne.s32.totalorder %s79, %s80
      %p92 = scmp.eq.s32.totalorder %s28, 1
      %p93 = por %p91, %p92
      %p95 = scmp.ne.s32.totalorder %s80, %s94
      %p96 = scmp.eq.s32.totalorder %s28, 0
      %p97 = por %p95, %p96
      %s99 = sadd.s32 %s98, 1
      %p102 = scmp.eq.s32.totalorder %s22, 1
      %p103 = scmp.ne.s32.totalorder %s98, %s100
      %p104 = scmp.eq.s32.totalorder %s22, 0
      %p105 = por %p103, %p104
      %p106 = scmp.ne.s32.totalorder %s98, %s100
      %p107 = scmp.eq.s32.totalorder %s27, 1
      %p108 = por %p106, %p107
      %p109 = scmp.ne.s32.totalorder %s100, %s101
      %p110 = scmp.eq.s32.totalorder %s27, 0
      %p111 = por %p109, %p110
      %p112 = scmp.ne.s32.totalorder %s100, %s101
      %p113 = scmp.eq.s32.totalorder %s28, 1
      %p114 = por %p112, %p113
      %p116 = scmp.ne.s32.totalorder %s101, %s115
      %p117 = scmp.eq.s32.totalorder %s28, 0
      %p118 = por %p116, %p117
      %s120 = sadd.s32 %s119, 1
      %p123 = scmp.eq.s32.totalorder %s22, 1
      %p124 = scmp.ne.s32.totalorder %s119, %s121
      %p125 = scmp.eq.s32.totalorder %s22, 0
      %p126 = por %p124, %p125
      %p127 = scmp.ne.s32.totalorder %s119, %s121
      %p128 = scmp.eq.s32.totalorder %s27, 1
      %p129 = por %p127, %p128
      %p130 = scmp.ne.s32.totalorder %s121, %s122
      %p131 = scmp.eq.s32.totalorder %s27, 0
      %p132 = por %p130, %p131
      %p133 = scmp.ne.s32.totalorder %s121, %s122
      %p134 = scmp.eq.s32.totalorder %s28, 1
      %p135 = por %p133, %p134
      %p137 = scmp.ne.s32.totalorder %s122, %s136
      %p138 = scmp.eq.s32.totalorder %s28, 0
      %p139 = por %p137, %p138
      %s141 = sadd.s32 %s140, 1
      %p144 = scmp.eq.s32.totalorder %s22, 1
      %p145 = scmp.ne.s32.totalorder %s140, %s142
      %p146 = scmp.eq.s32.totalorder %s22, 0
      %p147 = por %p145, %p146
      %p148 = scmp.ne.s32.totalorder %s140, %s142
      %p149 = scmp.eq.s32.totalorder %s27, 1
      %p150 = por %p148, %p149
      %p151 = scmp.ne.s32.totalorder %s142, %s143
      %p152 = scmp.eq.s32.totalorder %s27, 0
      %p153 = por %p151, %p152
      %p154 = scmp.ne.s32.totalorder %s142, %s143
      %p155 = scmp.eq.s32.totalorder %s28, 1
      %p156 = por %p154, %p155
      %p158 = scmp.ne.s32.totalorder %s143, %s157
      %p159 = scmp.eq.s32.totalorder %s28, 0
      %p160 = por %p158, %p159
      %s162 = sadd.s32 %s161, 1
      %p165 = scmp.eq.s32.totalorder %s22, 1
      %p166 = scmp.ne.s32.totalorder %s161, %s163
      %p167 = scmp.eq.s32.totalorder %s22, 0
      %p168 = por %p166, %p167
      %p169 = scmp.ne.s32.totalorder %s161, %s163
      %p170 = scmp.eq.s32.totalorder %s27, 1
      %p171 = por %p169, %p170
      %p172 = scmp.ne.s32.totalorder %s163, %s164
      %p173 = scmp.eq.s32.totalorder %s27, 0
      %p174 = por %p172, %p173
      %p175 = scmp.ne.s32.totalorder %s163, %s164
      %p176 = scmp.eq.s32.totalorder %s28, 1
      %p177 = por %p175, %p176
      %p179 = scmp.ne.s32.totalorder %s164, %s178
      %p180 = scmp.eq.s32.totalorder %s28, 0
      %p181 = por %p179, %p180
      %s183 = sadd.s32 %s182, 1
      %p186 = scmp.eq.s32.totalorder %s22, 1
      %p187 = scmp.ne.s32.totalorder %s182, %s184
      %p188 = scmp.eq.s32.totalorder %s22, 0
      %p189 = por %p187, %p188
      %p190 = scmp.ne.s32.totalorder %s182, %s184
      %p191 = scmp.eq.s32.totalorder %s27, 1
      %p192 = por %p190, %p191
      %p193 = scmp.ne.s32.totalorder %s184, %s185
      %p194 = scmp.eq.s32.totalorder %s27, 0
      %p195 = por %p193, %p194
      %p196 = scmp.ne.s32.totalorder %s184, %s185
      %p197 = scmp.eq.s32.totalorder %s28, 1
      %p198 = por %p196, %p197
      %p200 = scmp.ne.s32.totalorder %s185, %s199
      %p201 = scmp.eq.s32.totalorder %s28, 0
      %p202 = por %p200, %p201
      %s204 = sadd.s32 %s203, 1
      %p207 = scmp.eq.s32.totalorder %s22, 1
      %p208 = scmp.ne.s32.totalorder %s203, %s205
      %p209 = scmp.eq.s32.totalorder %s22, 0
      %p210 = por %p208, %p209
      %p211 = scmp.ne.s32.totalorder %s203, %s205
      %p212 = scmp.eq.s32.totalorder %s27, 1
      %p213 = por %p211, %p212
      %p214 = scmp.ne.s32.totalorder %s205, %s206
      %p215 = scmp.eq.s32.totalorder %s27, 0
      %p216 = por %p214, %p215
      %p217 = scmp.ne.s32.totalorder %s205, %s206
      %p218 = scmp.eq.s32.totalorder %s28, 1
      %p219 = por %p217, %p218
      %p221 = scmp.ne.s32.totalorder %s206, %s220
      %p222 = scmp.eq.s32.totalorder %s28, 0
      %p223 = por %p221, %p222
      %s225 = sadd.s32 %s224, 1
      %p228 = scmp.eq.s32.totalorder %s22, 1
      %p229 = scmp.ne.s32.totalorder %s224, %s226
      %p230 = scmp.eq.s32.totalorder %s22, 0
      %p231 = por %p229, %p230
      %p232 = scmp.ne.s32.totalorder %s224, %s226
      %p233 = scmp.eq.s32.totalorder %s27, 1
      %p234 = por %p232, %p233
      %p235 = scmp.ne.s32.totalorder %s226, %s227
      %p236 = scmp.eq.s32.totalorder %s27, 0
      %p237 = por %p235, %p236
      %p238 = scmp.ne.s32.totalorder %s226, %s227
      %p239 = scmp.eq.s32.totalorder %s28, 1
      %p240 = por %p238, %p239
      %p242 = scmp.ne.s32.totalorder %s227, %s241
      %p243 = scmp.eq.s32.totalorder %s28, 0
      %p244 = por %p242, %p243
      %s245 = ssub.s32 %s22, %s29
      %p246 = scmp.eq.s32.totalorder %s245, 0
      %s248 = sadd.s32 %s247, 1
      %s249 = scalar_select %p246, %s247, %s248
      %p252 = pneg %p246
      %p253 = scmp.eq.s32.totalorder %s22, 1
      %p254 = por %p252, %p253
      %p255 = scmp.ne.s32.totalorder %s247, %s250
      %p256 = scmp.eq.s32.totalorder %s22, 0
      %p257 = por %p255, %p256
      %p258 = scmp.ne.s32.totalorder %s247, %s250
      %p259 = scmp.eq.s32.totalorder %s27, 1
      %p260 = por %p258, %p259
      %p261 = scmp.ne.s32.totalorder %s250, %s251
      %p262 = scmp.eq.s32.totalorder %s27, 0
      %p263 = por %p261, %p262
      %p264 = scmp.ne.s32.totalorder %s250, %s251
      %p265 = scmp.eq.s32.totalorder %s28, 1
      %p266 = por %p264, %p265
      %p268 = scmp.ne.s32.totalorder %s251, %s267
      %p269 = scmp.eq.s32.totalorder %s28, 0
      %p270 = por %p268, %p269
      %p271 = scmp.le.s32.totalorder 1, %s22
      %p272 = scmp.lt.s32.totalorder %s22, 3
      %p273 = pnand %p271, %p272
      %p274 = pneg %p273
      // Predicated region
      $region9: #{tpu_custom_call.1} parent=5 // pred_check
        _
      $region10: #{tpu_custom_call.1} parent=5 // pred_check_branch
        %276 = sbr.rel (%p273) target = $region12
      $region11: #{tpu_custom_call.1} parent=5 // pred_region
        %s277 = ssub.s32 %s22, 1
        // Predicated region
        $region13: #{tpu_custom_call.1} parent=11 // pred_check
          %p278 = pneg %p69
        $region14: #{tpu_custom_call.1} parent=11 // pred_check_branch
          %280 = sbr.rel (%p278) target = $region16
        $region15: #{tpu_custom_call.1} parent=11 // pred_region
          _
        $region16: #{tpu_custom_call.1} parent=11 // pred_fallthru
          _
        // Predicated region
        $region17: #{tpu_custom_call.1} parent=11 // pred_check
          %p281 = pneg %p90
        $region18: #{tpu_custom_call.1} parent=11 // pred_check_branch
          %283 = sbr.rel (%p281) target = $region20
        $region19: #{tpu_custom_call.1} parent=11 // pred_region
          _
        $region20: #{tpu_custom_call.1} parent=11 // pred_fallthru
          _
        // Predicated region
        $region21: #{tpu_custom_call.1} parent=11 // pred_check
          %p284 = pneg %p111
        $region22: #{tpu_custom_call.1} parent=11 // pred_check_branch
          %286 = sbr.rel (%p284) target = $region24
        $region23: #{tpu_custom_call.1} parent=11 // pred_region
          %s288 = ssub.s32 256, 256
          %289 = vsyncadd [#allocation5], %s288
          %s290 = sshll.u32 [#allocation4], 4
          %s291 = int_to_ptr.vmem [resolvable:$true] %s290
          %296 = dma.hbm_to_vmem [thread:$0]  %s3, 256, %s291, [#allocation5], 128, 128, 8
        $region24: #{tpu_custom_call.1} parent=11 // pred_fallthru
          _
        // Predicated region
        $region25: #{tpu_custom_call.1} parent=11 // pred_check
          %p297 = pneg %p132
        $region26: #{tpu_custom_call.1} parent=11 // pred_check_branch
          %299 = sbr.rel (%p297) target = $region28
        $region27: #{tpu_custom_call.1} parent=11 // pred_region
          _
        $region28: #{tpu_custom_call.1} parent=11 // pred_fallthru
          _
        // Predicated region
        $region29: #{tpu_custom_call.1} parent=11 // pred_check
          %p300 = pneg %p153
        $region30: #{tpu_custom_call.1} parent=11 // pred_check_branch
          %302 = sbr.rel (%p300) target = $region32
        $region31: #{tpu_custom_call.1} parent=11 // pred_region
          _
        $region32: #{tpu_custom_call.1} parent=11 // pred_fallthru
          _
        // Predicated region
        $region33: #{tpu_custom_call.1} parent=11 // pred_check
          %p303 = pneg %p174
        $region34: #{tpu_custom_call.1} parent=11 // pred_check_branch
          %305 = sbr.rel (%p303) target = $region36
        $region35: #{tpu_custom_call.1} parent=11 // pred_region
          _
        $region36: #{tpu_custom_call.1} parent=11 // pred_fallthru
          _
        // Predicated region
        $region37: #{tpu_custom_call.1} parent=11 // pred_check
          %p306 = pneg %p195
        $region38: #{tpu_custom_call.1} parent=11 // pred_check_branch
          %308 = sbr.rel (%p306) target = $region40
        $region39: #{tpu_custom_call.1} parent=11 // pred_region
          _
        $region40: #{tpu_custom_call.1} parent=11 // pred_fallthru
          _
        // Predicated region
        $region41: #{tpu_custom_call.1} parent=11 // pred_check
          %p309 = pneg %p216
        $region42: #{tpu_custom_call.1} parent=11 // pred_check_branch
          %311 = sbr.rel (%p309) target = $region44
        $region43: #{tpu_custom_call.1} parent=11 // pred_region
          _
        $region44: #{tpu_custom_call.1} parent=11 // pred_fallthru
          _
        // Predicated region
        $region45: #{tpu_custom_call.1} parent=11 // pred_check
          %p312 = pneg %p237
        $region46: #{tpu_custom_call.1} parent=11 // pred_check_branch
          %314 = sbr.rel (%p312) target = $region48
        $region47: #{tpu_custom_call.1} parent=11 // pred_region
          _
        $region48: #{tpu_custom_call.1} parent=11 // pred_fallthru
          _
      $region12: #{tpu_custom_call.1} parent=5 // pred_fallthru
        _
      %p315 = scmp.lt.s32.totalorder %s22, 2
      // Predicated region
      $region49: #{tpu_custom_call.1} parent=5 // pred_check
        %p316 = pneg %p315
      $region50: #{tpu_custom_call.1} parent=5 // pred_check_branch
        %318 = sbr.rel (%p316) target = $region52
      $region51: #{tpu_custom_call.1} parent=5 // pred_region
        // Predicated region
        $region53: #{tpu_custom_call.1} parent=51 // pred_check
          %p319 = pneg %p42
        $region54: #{tpu_custom_call.1} parent=51 // pred_check_branch
          %321 = sbr.rel (%p319) target = $region56
        $region55: #{tpu_custom_call.1} parent=51 // pred_region
          %p322 = scmp.lt.s32.totalorder %s22, 1
          %s323 = scalar_select %p322, %s22, 1
          %s324 = smul.addr %s323, 16
          %s325 = smul.addr %s324, 8
          %s326 = scalar_lea.vmem %s0, %s325
        $region56: #{tpu_custom_call.1} parent=51 // pred_fallthru
          _
      $region52: #{tpu_custom_call.1} parent=5 // pred_fallthru
        _
      %p327 = scmp.le.s32.totalorder 1, %s22
      %p328 = scmp.lt.s32.totalorder %s22, 3
      %p329 = pnand %p327, %p328
      %p330 = pneg %p329
      // Predicated region
      $region57: #{tpu_custom_call.1} parent=5 // pred_check
        _
      $region58: #{tpu_custom_call.1} parent=5 // pred_check_branch
        %332 = sbr.rel (%p329) target = $region60
      $region59: #{tpu_custom_call.1} parent=5 // pred_region
        %s333 = ssub.s32 %s22, 1
        // Predicated region
        $region61: #{tpu_custom_call.1} parent=59 // pred_check
          %p334 = pneg %p111
        $region62: #{tpu_custom_call.1} parent=59 // pred_check_branch
          %336 = sbr.rel (%p334) target = $region64
        $region63: #{tpu_custom_call.1} parent=59 // pred_region
          %337 = dma.done [#allocation5], 256
        $region64: #{tpu_custom_call.1} parent=59 // pred_fallthru
          _
        %p338 = scmp.lt.s32.totalorder %s27, 1
        %s339 = scalar_select %p338, %s27, 1
        %s340 = smul.addr %s339, 16
        %s341 = smul.addr %s340, 8
        %s342 = scalar_lea.vmem %s0, %s341
        %p343 = pneg %p48
        %p344 = pneg %p45
        %p345 = pneg %p69
        %p346 = pneg %p66
        %p347 = pneg %p90
        %p348 = pneg %p87
        %p349 = pneg %p111
        %p350 = pneg %p108
        %p351 = pneg %p132
        %p352 = pneg %p129
        %p353 = pneg %p153
        %p354 = pneg %p150
        %p355 = pneg %p174
        %p356 = pneg %p171
        %p357 = pneg %p195
        %p358 = pneg %p192
        %p359 = pneg %p216
        %p360 = pneg %p213
        %p361 = pneg %p237
        %p362 = pneg %p234
        %p363 = pneg %p263
        %p364 = pneg %p260
        %s365 = sand.u32 %s250, 1
        %s366 = scalar_lea.sflag [#allocation6], %s365
        %s367 = sand.u32 %s250, 1
        %s368 = smul.addr %s367, 128
        %s369 = scalar_lea.vmem [#allocation7], %s368
        %p370 = scmp.lt.s32.totalorder %s27, 1
        %s371 = scalar_select %p370, %s27, 1
        %s372 = smul.addr %s371, 16
        %s373 = smul.addr %s372, 8
        %s374 = scalar_lea.vmem %s0, %s373
        %v375 = vld [vmem:[%s374] sm:$0xff]
        %v376 = vld [vmem:[%s374 + $0x8] sm:$0xff]
        %v377 = vld [vmem:[%s374 + $0x10] sm:$0xff]
        %v378 = vld [vmem:[%s374 + $0x18] sm:$0xff]
        %v379 = vld [vmem:[%s374 + $0x20] sm:$0xff]
        %v380 = vld [vmem:[%s374 + $0x28] sm:$0xff]
        %v381 = vld [vmem:[%s374 + $0x30] sm:$0xff]
        %v382 = vld [vmem:[%s374 + $0x38] sm:$0xff]
        %v383 = vld [vmem:[%s374 + $0x40] sm:$0xff]
        %v384 = vld [vmem:[%s374 + $0x48] sm:$0xff]
        %v385 = vld [vmem:[%s374 + $0x50] sm:$0xff]
        %v386 = vld [vmem:[%s374 + $0x58] sm:$0xff]
        %v387 = vld [vmem:[%s374 + $0x60] sm:$0xff]
        %v388 = vld [vmem:[%s374 + $0x68] sm:$0xff]
        %v389 = vld [vmem:[%s374 + $0x70] sm:$0xff]
        %v390 = vld [vmem:[%s374 + $0x78] sm:$0xff]
        %v391 = vld [vmem:[%s1] sm:$0xff]
        %v392 = vld [vmem:[%s1 + $0x8] sm:$0xff]
        %v393 = vld [vmem:[%s1 + $0x10] sm:$0xff]
        %v394 = vld [vmem:[%s1 + $0x18] sm:$0xff]
        %v395 = vld [vmem:[%s1 + $0x20] sm:$0xff]
        %v396 = vld [vmem:[%s1 + $0x28] sm:$0xff]
        %v397 = vld [vmem:[%s1 + $0x30] sm:$0xff]
        %v398 = vld [vmem:[%s1 + $0x38] sm:$0xff]
        %s399 = sld [smem:[#allocation2]]
        %v400 = vstv %s399
        %401 = vxpose.xlu0.b32.start [1/16] %v391, 128
        %402 = vxpose.xlu0.b32.cont [2/16] %v392, 128
        %403 = vxpose.xlu0.b32.cont [3/16] %v393, 128
        %404 = vxpose.xlu0.b32.cont [4/16] %v394, 128
        %405 = vxpose.xlu0.b32.cont [5/16] %v395, 128
        %406 = vxpose.xlu0.b32.cont [6/16] %v396, 128
        %407 = vxpose.xlu0.b32.cont [7/16] %v397, 128
        %408 = vxpose.xlu0.b32.cont [8/16] %v398, 128
        %409 = vxpose.xlu0.b32.cont [9/16] 0.0, 128
        %410 = vxpose.xlu0.b32.cont [10/16] 0.0, 128
        %411 = vxpose.xlu0.b32.cont [11/16] 0.0, 128
        %412 = vxpose.xlu0.b32.cont [12/16] 0.0, 128
        %413 = vxpose.xlu0.b32.cont [13/16] 0.0, 128
        %414 = vxpose.xlu0.b32.cont [14/16] 0.0, 128
        %415 = vxpose.xlu0.b32.cont [15/16] 0.0, 128
        %416 = vxpose.xlu0.b32.end [16/16] 0.0, 128
        %v417 = vpop.trf.xlu0
        %v418 = vpop.trf.xlu0
        %v419 = vpop.trf.xlu0
        %v420 = vpop.trf.xlu0
        %v421 = vpop.trf.xlu0
        %v422 = vpop.trf.xlu0
        %v423 = vpop.trf.xlu0
        %v424 = vpop.trf.xlu0
        %v425 = vpop.trf.xlu0
        %v426 = vpop.trf.xlu0
        %v427 = vpop.trf.xlu0
        %v428 = vpop.trf.xlu0
        %v429 = vpop.trf.xlu0
        %v430 = vpop.trf.xlu0
        %v431 = vpop.trf.xlu0
        %v432 = vpop.trf.xlu0
        %vm433 = vcmask 523264
        %v435 = vsel %vm433, %v417, 0
        %v437 = vand.u32 %v376, 4294901760
        %438 = vmatprep.subr.mxu0 %v437
        %v439 = vand.u32 %v375, 4294901760
        %440 = vmatpush1.msra.mxu0 %v439
        %v441 = vand.u32 %v378, 4294901760
        %442 = vmatprep.subr.mxu0 %v441
        %v443 = vand.u32 %v377, 4294901760
        %444 = vmatpush1.msra.mxu0 %v443
        %v445 = vand.u32 %v380, 4294901760
        %446 = vmatprep.subr.mxu0 %v445
        %v447 = vand.u32 %v379, 4294901760
        %448 = vmatpush1.msra.mxu0 %v447
        %v449 = vand.u32 %v382, 4294901760
        %450 = vmatprep.subr.mxu0 %v449
        %v451 = vand.u32 %v381, 4294901760
        %452 = vmatpush1.msra.mxu0 %v451
        %v453 = vand.u32 %v384, 4294901760
        %454 = vmatprep.subr.mxu0 %v453
        %v455 = vand.u32 %v383, 4294901760
        %456 = vmatpush1.msra.mxu0 %v455
        %v457 = vand.u32 %v386, 4294901760
        %458 = vmatprep.subr.mxu0 %v457
        %v459 = vand.u32 %v385, 4294901760
        %460 = vmatpush1.msra.mxu0 %v459
        %v461 = vand.u32 %v388, 4294901760
        %462 = vmatprep.subr.mxu0 %v461
        %v463 = vand.u32 %v387, 4294901760
        %464 = vmatpush1.msra.mxu0 %v463
        %v465 = vand.u32 %v390, 4294901760
        %466 = vmatprep.subr.mxu0 %v465
        %v467 = vand.u32 %v389, 4294901760
        %468 = vmatpush1.msra.mxu0 %v467
        %469 = vmatprep.subr.mxu0 0.0
        %470 = vmatpush1.msra.mxu0 0.0
        %471 = vmatprep.subr.mxu0 0.0
        %472 = vmatpush1.msra.mxu0 0.0
        %473 = vmatprep.subr.mxu0 0.0
        %474 = vmatpush1.msra.mxu0 0.0
        %475 = vmatprep.subr.mxu0 0.0
        %476 = vmatpush1.msra.mxu0 0.0
        %477 = vmatprep.subr.mxu0 0.0
        %478 = vmatpush1.msra.mxu0 0.0
        %479 = vmatprep.subr.mxu0 0.0
        %480 = vmatpush1.msra.mxu0 0.0
        %481 = vmatprep.subr.mxu0 0.0
        %482 = vmatpush1.msra.mxu0 0.0
        %483 = vmatprep.subr.mxu0 0.0
        %484 = vmatpush1.msra.mxu0 0.0
        %485 = vmatprep.subr.mxu0 0.0
        %486 = vmatpush1.msra.mxu0 0.0
        %487 = vmatprep.subr.mxu0 0.0
        %488 = vmatpush1.msra.mxu0 0.0
        %489 = vmatprep.subr.mxu0 0.0
        %490 = vmatpush1.msra.mxu0 0.0
        %491 = vmatprep.subr.mxu0 0.0
        %492 = vmatpush1.msra.mxu0 0.0
        %493 = vmatprep.subr.mxu0 0.0
        %494 = vmatpush1.msra.mxu0 0.0
        %495 = vmatprep.subr.mxu0 0.0
        %496 = vmatpush1.msra.mxu0 0.0
        %497 = vmatprep.subr.mxu0 0.0
        %498 = vmatpush1.msra.mxu0 0.0
        %499 = vmatprep.subr.mxu0 0.0
        %500 = vmatpush1.msra.mxu0 0.0
        %501 = vmatprep.subr.mxu0 0.0
        %502 = vmatpush1.msra.mxu0 0.0
        %503 = vmatprep.subr.mxu0 0.0
        %504 = vmatpush1.msra.mxu0 0.0
        %505 = vmatprep.subr.mxu0 0.0
        %506 = vmatpush1.msra.mxu0 0.0
        %507 = vmatprep.subr.mxu0 0.0
        %508 = vmatpush1.msra.mxu0 0.0
        %509 = vmatprep.subr.mxu0 0.0
        %510 = vmatpush1.msra.mxu0 0.0
        %511 = vmatprep.subr.mxu0 0.0
        %512 = vmatpush1.msra.mxu0 0.0
        %513 = vmatprep.subr.mxu0 0.0
        %514 = vmatpush1.msra.mxu0 0.0
        %515 = vmatprep.subr.mxu0 0.0
        %516 = vmatpush1.msra.mxu0 0.0
        %517 = vmatprep.mubr.f32.mxu0 0.0
        %v518 = vand.u32 %v435, 4294901760
        %v519 = vsub.f32 %v435, %v518
        %v520 = vand.u32 %v519, 4294901760
        %v521 = vsub.f32 %v519, %v520
        %v522 = vand.u32 %v521, 4294901760
        %523 = vmatmul.mubr.f32.gmra.mrb[0].mxu0 %v522
        %v524 = vpop.f32.mrb[0].mxu0
        %v525 = vadd.f32 %v400, %v524
        %v526 = vpop.f32.mrb[0].mxu0
        %v527 = vadd.f32 %v400, %v526
        %528 = vdwg.mxu0
        %v529 = vand.u32 %v376, 4294901760
        %v530 = vsub.f32 %v376, %v529
        %v531 = vand.u32 %v530, 4294901760
        %v532 = vsub.f32 %v530, %v531
        %v533 = vand.u32 %v532, 4294901760
        %534 = vmatprep.subr.mxu0 %v533
        %v535 = vand.u32 %v375, 4294901760
        %v536 = vsub.f32 %v375, %v535
        %v537 = vand.u32 %v536, 4294901760
        %v538 = vsub.f32 %v536, %v537
        %v539 = vand.u32 %v538, 4294901760
        %540 = vmatpush1.msra.mxu0 %v539
        %v541 = vand.u32 %v378, 4294901760
        %v542 = vsub.f32 %v378, %v541
        %v543 = vand.u32 %v542, 4294901760
        %v544 = vsub.f32 %v542, %v543
        %v545 = vand.u32 %v544, 4294901760
        %546 = vmatprep.subr.mxu0 %v545
        %v547 = vand.u32 %v377, 4294901760
        %v548 = vsub.f32 %v377, %v547
        %v549 = vand.u32 %v548, 4294901760
        %v550 = vsub.f32 %v548, %v549
        %v551 = vand.u32 %v550, 4294901760
        %552 = vmatpush1.msra.mxu0 %v551
        %v553 = vand.u32 %v380, 4294901760
        %v554 = vsub.f32 %v380, %v553
        %v555 = vand.u32 %v554, 4294901760
        %v556 = vsub.f32 %v554, %v555
        %v557 = vand.u32 %v556, 4294901760
        %558 = vmatprep.subr.mxu0 %v557
        %v559 = vand.u32 %v379, 4294901760
        %v560 = vsub.f32 %v379, %v559
        %v561 = vand.u32 %v560, 4294901760
        %v562 = vsub.f32 %v560, %v561
        %v563 = vand.u32 %v562, 4294901760
        %564 = vmatpush1.msra.mxu0 %v563
        %v565 = vand.u32 %v382, 4294901760
        %v566 = vsub.f32 %v382, %v565
        %v567 = vand.u32 %v566, 4294901760
        %v568 = vsub.f32 %v566, %v567
        %v569 = vand.u32 %v568, 4294901760
        %570 = vmatprep.subr.mxu0 %v569
        %v571 = vand.u32 %v381, 4294901760
        %v572 = vsub.f32 %v381, %v571
        %v573 = vand.u32 %v572, 4294901760
        %v574 = vsub.f32 %v572, %v573
        %v575 = vand.u32 %v574, 4294901760
        %576 = vmatpush1.msra.mxu0 %v575
        %v577 = vand.u32 %v384, 4294901760
        %v578 = vsub.f32 %v384, %v577
        %v579 = vand.u32 %v578, 4294901760
        %v580 = vsub.f32 %v578, %v579
        %v581 = vand.u32 %v580, 4294901760
        %582 = vmatprep.subr.mxu0 %v581
        %v583 = vand.u32 %v383, 4294901760
        %v584 = vsub.f32 %v383, %v583
        %v585 = vand.u32 %v584, 4294901760
        %v586 = vsub.f32 %v584, %v585
        %v587 = vand.u32 %v586, 4294901760
        %588 = vmatpush1.msra.mxu0 %v587
        %v589 = vand.u32 %v386, 4294901760
        %v590 = vsub.f32 %v386, %v589
        %v591 = vand.u32 %v590, 4294901760
        %v592 = vsub.f32 %v590, %v591
        %v593 = vand.u32 %v592, 4294901760
        %594 = vmatprep.subr.mxu0 %v593
        %v595 = vand.u32 %v385, 4294901760
        %v596 = vsub.f32 %v385, %v595
        %v597 = vand.u32 %v596, 4294901760
        %v598 = vsub.f32 %v596, %v597
        %v599 = vand.u32 %v598, 4294901760
        %600 = vmatpush1.msra.mxu0 %v599
        %v601 = vand.u32 %v388, 4294901760
        %v602 = vsub.f32 %v388, %v601
        %v603 = vand.u32 %v602, 4294901760
        %v604 = vsub.f32 %v602, %v603
        %v605 = vand.u32 %v604, 4294901760
        %606 = vmatprep.subr.mxu0 %v605
        %v607 = vand.u32 %v387, 4294901760
        %v608 = vsub.f32 %v387, %v607
        %v609 = vand.u32 %v608, 4294901760
        %v610 = vsub.f32 %v608, %v609
        %v611 = vand.u32 %v610, 4294901760
        %612 = vmatpush1.msra.mxu0 %v611
        %v613 = vand.u32 %v390, 4294901760
        %v614 = vsub.f32 %v390, %v613
        %v615 = vand.u32 %v614, 4294901760
        %v616 = vsub.f32 %v614, %v615
        %v617 = vand.u32 %v616, 4294901760
        %618 = vmatprep.subr.mxu0 %v617
        %v619 = vand.u32 %v389, 4294901760
        %v620 = vsub.f32 %v389, %v619
        %v621 = vand.u32 %v620, 4294901760
        %v622 = vsub.f32 %v620, %v621
        %v623 = vand.u32 %v622, 4294901760
        %624 = vmatpush1.msra.mxu0 %v623
        %625 = vmatprep.subr.mxu0 0.0
        %626 = vmatpush1.msra.mxu0 0.0
        %627 = vmatprep.subr.mxu0 0.0
        %628 = vmatpush1.msra.mxu0 0.0
        %629 = vmatprep.subr.mxu0 0.0
        %630 = vmatpush1.msra.mxu0 0.0
        %631 = vmatprep.subr.mxu0 0.0
        %632 = vmatpush1.msra.mxu0 0.0
        %633 = vmatprep.subr.mxu0 0.0
        %634 = vmatpush1.msra.mxu0 0.0
        %635 = vmatprep.subr.mxu0 0.0
        %636 = vmatpush1.msra.mxu0 0.0
        %637 = vmatprep.subr.mxu0 0.0
        %638 = vmatpush1.msra.mxu0 0.0
        %639 = vmatprep.subr.mxu0 0.0
        %640 = vmatpush1.msra.mxu0 0.0
        %641 = vmatprep.subr.mxu0 0.0
        %642 = vmatpush1.msra.mxu0 0.0
        %643 = vmatprep.subr.mxu0 0.0
        %644 = vmatpush1.msra.mxu0 0.0
        %645 = vmatprep.subr.mxu0 0.0
        %646 = vmatpush1.msra.mxu0 0.0
        %647 = vmatprep.subr.mxu0 0.0
        %648 = vmatpush1.msra.mxu0 0.0
        %649 = vmatprep.subr.mxu0 0.0
        %650 = vmatpush1.msra.mxu0 0.0
        %651 = vmatprep.subr.mxu0 0.0
        %652 = vmatpush1.msra.mxu0 0.0
        %653 = vmatprep.subr.mxu0 0.0
        %654 = vmatpush1.msra.mxu0 0.0
        %655 = vmatprep.subr.mxu0 0.0
        %656 = vmatpush1.msra.mxu0 0.0
        %657 = vmatprep.subr.mxu0 0.0
        %658 = vmatpush1.msra.mxu0 0.0
        %659 = vmatprep.subr.mxu0 0.0
        %660 = vmatpush1.msra.mxu0 0.0
        %661 = vmatprep.subr.mxu0 0.0
        %662 = vmatpush1.msra.mxu0 0.0
        %663 = vmatprep.subr.mxu0 0.0
        %664 = vmatpush1.msra.mxu0 0.0
        %665 = vmatprep.subr.mxu0 0.0
        %666 = vmatpush1.msra.mxu0 0.0
        %667 = vmatprep.subr.mxu0 0.0
        %668 = vmatpush1.msra.mxu0 0.0
        %669 = vmatprep.subr.mxu0 0.0
        %670 = vmatpush1.msra.mxu0 0.0
        %671 = vmatprep.subr.mxu0 0.0
        %672 = vmatpush1.msra.mxu0 0.0
        %673 = vmatprep.mubr.f32.mxu0 0.0
        %v674 = vand.u32 %v435, 4294901760
        %675 = vmatmul.mubr.f32.gmra.mrb[0].mxu0 %v674
        %v676 = vpop.f32.mrb[0].mxu0
        %v677 = vadd.f32 %v525, %v676
        %v678 = vpop.f32.mrb[0].mxu0
        %v679 = vadd.f32 %v527, %v678
        %680 = vdwg.mxu0
        %v681 = vand.u32 %v376, 4294901760
        %v682 = vsub.f32 %v376, %v681
        %683 = vmatprep.subr.mxu0 %v682
        %v684 = vand.u32 %v375, 4294901760
        %v685 = vsub.f32 %v375, %v684
        %686 = vmatpush1.msra.mxu0 %v685
        %v687 = vand.u32 %v378, 4294901760
        %v688 = vsub.f32 %v378, %v687
        %689 = vmatprep.subr.mxu0 %v688
        %v690 = vand.u32 %v377, 4294901760
        %v691 = vsub.f32 %v377, %v690
        %692 = vmatpush1.msra.mxu0 %v691
        %v693 = vand.u32 %v380, 4294901760
        %v694 = vsub.f32 %v380, %v693
        %695 = vmatprep.subr.mxu0 %v694
        %v696 = vand.u32 %v379, 4294901760
        %v697 = vsub.f32 %v379, %v696
        %698 = vmatpush1.msra.mxu0 %v697
        %v699 = vand.u32 %v382, 4294901760
        %v700 = vsub.f32 %v382, %v699
        %701 = vmatprep.subr.mxu0 %v700
        %v702 = vand.u32 %v381, 4294901760
        %v703 = vsub.f32 %v381, %v702
        %704 = vmatpush1.msra.mxu0 %v703
        %v705 = vand.u32 %v384, 4294901760
        %v706 = vsub.f32 %v384, %v705
        %707 = vmatprep.subr.mxu0 %v706
        %v708 = vand.u32 %v383, 4294901760
        %v709 = vsub.f32 %v383, %v708
        %710 = vmatpush1.msra.mxu0 %v709
        %v711 = vand.u32 %v386, 4294901760
        %v712 = vsub.f32 %v386, %v711
        %713 = vmatprep.subr.mxu0 %v712
        %v714 = vand.u32 %v385, 4294901760
        %v715 = vsub.f32 %v385, %v714
        %716 = vmatpush1.msra.mxu0 %v715
        %v717 = vand.u32 %v388, 4294901760
        %v718 = vsub.f32 %v388, %v717
        %719 = vmatprep.subr.mxu0 %v718
        %v720 = vand.u32 %v387, 4294901760
        %v721 = vsub.f32 %v387, %v720
        %722 = vmatpush1.msra.mxu0 %v721
        %v723 = vand.u32 %v390, 4294901760
        %v724 = vsub.f32 %v390, %v723
        %725 = vmatprep.subr.mxu0 %v724
        %v726 = vand.u32 %v389, 4294901760
        %v727 = vsub.f32 %v389, %v726
        %728 = vmatpush1.msra.mxu0 %v727
        %729 = vmatprep.subr.mxu0 0.0
        %730 = vmatpush1.msra.mxu0 0.0
        %731 = vmatprep.subr.mxu0 0.0
        %732 = vmatpush1.msra.mxu0 0.0
        %733 = vmatprep.subr.mxu0 0.0
        %734 = vmatpush1.msra.mxu0 0.0
        %735 = vmatprep.subr.mxu0 0.0
        %736 = vmatpush1.msra.mxu0 0.0
        %737 = vmatprep.subr.mxu0 0.0
        %738 = vmatpush1.msra.mxu0 0.0
        %739 = vmatprep.subr.mxu0 0.0
        %740 = vmatpush1.msra.mxu0 0.0
        %741 = vmatprep.subr.mxu0 0.0
        %742 = vmatpush1.msra.mxu0 0.0
        %743 = vmatprep.subr.mxu0 0.0
        %744 = vmatpush1.msra.mxu0 0.0
        %745 = vmatprep.subr.mxu0 0.0
        %746 = vmatpush1.msra.mxu0 0.0
        %747 = vmatprep.subr.mxu0 0.0
        %748 = vmatpush1.msra.mxu0 0.0
        %749 = vmatprep.subr.mxu0 0.0
        %750 = vmatpush1.msra.mxu0 0.0
        %751 = vmatprep.subr.mxu0 0.0
        %752 = vmatpush1.msra.mxu0 0.0
        %753 = vmatprep.subr.mxu0 0.0
        %754 = vmatpush1.msra.mxu0 0.0
        %755 = vmatprep.subr.mxu0 0.0
        %756 = vmatpush1.msra.mxu0 0.0
        %757 = vmatprep.subr.mxu0 0.0
        %758 = vmatpush1.msra.mxu0 0.0
        %759 = vmatprep.subr.mxu0 0.0
        %760 = vmatpush1.msra.mxu0 0.0
        %761 = vmatprep.subr.mxu0 0.0
        %762 = vmatpush1.msra.mxu0 0.0
        %763 = vmatprep.subr.mxu0 0.0
        %764 = vmatpush1.msra.mxu0 0.0
        %765 = vmatprep.subr.mxu0 0.0
        %766 = vmatpush1.msra.mxu0 0.0
        %767 = vmatprep.subr.mxu0 0.0
        %768 = vmatpush1.msra.mxu0 0.0
        %769 = vmatprep.subr.mxu0 0.0
        %770 = vmatpush1.msra.mxu0 0.0
        %771 = vmatprep.subr.mxu0 0.0
        %772 = vmatpush1.msra.mxu0 0.0
        %773 = vmatprep.subr.mxu0 0.0
        %774 = vmatpush1.msra.mxu0 0.0
        %775 = vmatprep.subr.mxu0 0.0
        %776 = vmatpush1.msra.mxu0 0.0
        %777 = vmatprep.mubr.f32.mxu0 0.0
        %v778 = vand.u32 %v435, 4294901760
        %v779 = vsub.f32 %v435, %v778
        %780 = vmatmul.mubr.f32.gmra.mrb[0].mxu0 %v779
        %v781 = vpop.f32.mrb[0].mxu0
        %v782 = vadd.f32 %v677, %v781
        %v783 = vpop.f32.mrb[0].mxu0
        %v784 = vadd.f32 %v679, %v783
        %785 = vdwg.mxu0
        %v786 = vand.u32 %v376, 4294901760
        %787 = vmatprep.subr.mxu0 %v786
        %v788 = vand.u32 %v375, 4294901760
        %789 = vmatpush1.msra.mxu0 %v788
        %v790 = vand.u32 %v378, 4294901760
        %791 = vmatprep.subr.mxu0 %v790
        %v792 = vand.u32 %v377, 4294901760
        %793 = vmatpush1.msra.mxu0 %v792
        %v794 = vand.u32 %v380, 4294901760
        %795 = vmatprep.subr.mxu0 %v794
        %v796 = vand.u32 %v379, 4294901760
        %797 = vmatpush1.msra.mxu0 %v796
        %v798 = vand.u32 %v382, 4294901760
        %799 = vmatprep.subr.mxu0 %v798
        %v800 = vand.u32 %v381, 4294901760
        %801 = vmatpush1.msra.mxu0 %v800
        %v802 = vand.u32 %v384, 4294901760
        %803 = vmatprep.subr.mxu0 %v802
        %v804 = vand.u32 %v383, 4294901760
        %805 = vmatpush1.msra.mxu0 %v804
        %v806 = vand.u32 %v386, 4294901760
        %807 = vmatprep.subr.mxu0 %v806
        %v808 = vand.u32 %v385, 4294901760
        %809 = vmatpush1.msra.mxu0 %v808
        %v810 = vand.u32 %v388, 4294901760
        %811 = vmatprep.subr.mxu0 %v810
        %v812 = vand.u32 %v387, 4294901760
        %813 = vmatpush1.msra.mxu0 %v812
        %v814 = vand.u32 %v390, 4294901760
        %815 = vmatprep.subr.mxu0 %v814
        %v816 = vand.u32 %v389, 4294901760
        %817 = vmatpush1.msra.mxu0 %v816
        %818 = vmatprep.subr.mxu0 0.0
        %819 = vmatpush1.msra.mxu0 0.0
        %820 = vmatprep.subr.mxu0 0.0
        %821 = vmatpush1.msra.mxu0 0.0
        %822 = vmatprep.subr.mxu0 0.0
        %823 = vmatpush1.msra.mxu0 0.0
        %824 = vmatprep.subr.mxu0 0.0
        %825 = vmatpush1.msra.mxu0 0.0
        %826 = vmatprep.subr.mxu0 0.0
        %827 = vmatpush1.msra.mxu0 0.0
        %828 = vmatprep.subr.mxu0 0.0
        %829 = vmatpush1.msra.mxu0 0.0
        %830 = vmatprep.subr.mxu0 0.0
        %831 = vmatpush1.msra.mxu0 0.0
        %832 = vmatprep.subr.mxu0 0.0
        %833 = vmatpush1.msra.mxu0 0.0
        %834 = vmatprep.subr.mxu0 0.0
        %835 = vmatpush1.msra.mxu0 0.0
        %836 = vmatprep.subr.mxu0 0.0
        %837 = vmatpush1.msra.mxu0 0.0
        %838 = vmatprep.subr.mxu0 0.0
        %839 = vmatpush1.msra.mxu0 0.0
        %840 = vmatprep.subr.mxu0 0.0
        %841 = vmatpush1.msra.mxu0 0.0
        %842 = vmatprep.subr.mxu0 0.0
        %843 = vmatpush1.msra.mxu0 0.0
        %844 = vmatprep.subr.mxu0 0.0
        %845 = vmatpush1.msra.mxu0 0.0
        %846 = vmatprep.subr.mxu0 0.0
        %847 = vmatpush1.msra.mxu0 0.0
        %848 = vmatprep.subr.mxu0 0.0
        %849 = vmatpush1.msra.mxu0 0.0
        %850 = vmatprep.subr.mxu0 0.0
        %851 = vmatpush1.msra.mxu0 0.0
        %852 = vmatprep.subr.mxu0 0.0
        %853 = vmatpush1.msra.mxu0 0.0
        %854 = vmatprep.subr.mxu0 0.0
        %855 = vmatpush1.msra.mxu0 0.0
        %856 = vmatprep.subr.mxu0 0.0
        %857 = vmatpush1.msra.mxu0 0.0
        %858 = vmatprep.subr.mxu0 0.0
        %859 = vmatpush1.msra.mxu0 0.0
        %860 = vmatprep.subr.mxu0 0.0
        %861 = vmatpush1.msra.mxu0 0.0
        %862 = vmatprep.subr.mxu0 0.0
        %863 = vmatpush1.msra.mxu0 0.0
        %864 = vmatprep.subr.mxu0 0.0
        %865 = vmatpush1.msra.mxu0 0.0
        %866 = vmatprep.mubr.f32.mxu0 0.0
        %v867 = vand.u32 %v435, 4294901760
        %v868 = vsub.f32 %v435, %v867
        %v869 = vand.u32 %v868, 4294901760
        %870 = vmatmul.mubr.f32.gmra.mrb[0].mxu0 %v869
        %v871 = vpop.f32.mrb[0].mxu0
        %v872 = vadd.f32 %v782, %v871
        %v873 = vpop.f32.mrb[0].mxu0
        %v874 = vadd.f32 %v784, %v873
        %875 = vdwg.mxu0
        %v876 = vand.u32 %v376, 4294901760
        %v877 = vsub.f32 %v376, %v876
        %v878 = vand.u32 %v877, 4294901760
        %879 = vmatprep.subr.mxu0 %v878
        %v880 = vand.u32 %v375, 4294901760
        %v881 = vsub.f32 %v375, %v880
        %v882 = vand.u32 %v881, 4294901760
        %883 = vmatpush1.msra.mxu0 %v882
        %v884 = vand.u32 %v378, 4294901760
        %v885 = vsub.f32 %v378, %v884
        %v886 = vand.u32 %v885, 4294901760
        %887 = vmatprep.subr.mxu0 %v886
        %v888 = vand.u32 %v377, 4294901760
        %v889 = vsub.f32 %v377, %v888
        %v890 = vand.u32 %v889, 4294901760
        %891 = vmatpush1.msra.mxu0 %v890
        %v892 = vand.u32 %v380, 4294901760
        %v893 = vsub.f32 %v380, %v892
        %v894 = vand.u32 %v893, 4294901760
        %895 = vmatprep.subr.mxu0 %v894
        %v896 = vand.u32 %v379, 4294901760
        %v897 = vsub.f32 %v379, %v896
        %v898 = vand.u32 %v897, 4294901760
        %899 = vmatpush1.msra.mxu0 %v898
        %v900 = vand.u32 %v382, 4294901760
        %v901 = vsub.f32 %v382, %v900
        %v902 = vand.u32 %v901, 4294901760
        %903 = vmatprep.subr.mxu0 %v902
        %v904 = vand.u32 %v381, 4294901760
        %v905 = vsub.f32 %v381, %v904
        %v906 = vand.u32 %v905, 4294901760
        %907 = vmatpush1.msra.mxu0 %v906
        %v908 = vand.u32 %v384, 4294901760
        %v909 = vsub.f32 %v384, %v908
        %v910 = vand.u32 %v909, 4294901760
        %911 = vmatprep.subr.mxu0 %v910
        %v912 = vand.u32 %v383, 4294901760
        %v913 = vsub.f32 %v383, %v912
        %v914 = vand.u32 %v913, 4294901760
        %915 = vmatpush1.msra.mxu0 %v914
        %v916 = vand.u32 %v386, 4294901760
        %v917 = vsub.f32 %v386, %v916
        %v918 = vand.u32 %v917, 4294901760
        %919 = vmatprep.subr.mxu0 %v918
        %v920 = vand.u32 %v385, 4294901760
        %v921 = vsub.f32 %v385, %v920
        %v922 = vand.u32 %v921, 4294901760
        %923 = vmatpush1.msra.mxu0 %v922
        %v924 = vand.u32 %v388, 4294901760
        %v925 = vsub.f32 %v388, %v924
        %v926 = vand.u32 %v925, 4294901760
        %927 = vmatprep.subr.mxu0 %v926
        %v928 = vand.u32 %v387, 4294901760
        %v929 = vsub.f32 %v387, %v928
        %v930 = vand.u32 %v929, 4294901760
        %931 = vmatpush1.msra.mxu0 %v930
        %v932 = vand.u32 %v390, 4294901760
        %v933 = vsub.f32 %v390, %v932
        %v934 = vand.u32 %v933, 4294901760
        %935 = vmatprep.subr.mxu0 %v934
        %v936 = vand.u32 %v389, 4294901760
        %v937 = vsub.f32 %v389, %v936
        %v938 = vand.u32 %v937, 4294901760
        %939 = vmatpush1.msra.mxu0 %v938
        %940 = vmatprep.subr.mxu0 0.0
        %941 = vmatpush1.msra.mxu0 0.0
        %942 = vmatprep.subr.mxu0 0.0
        %943 = vmatpush1.msra.mxu0 0.0
        %944 = vmatprep.subr.mxu0 0.0
        %945 = vmatpush1.msra.mxu0 0.0
        %946 = vmatprep.subr.mxu0 0.0
        %947 = vmatpush1.msra.mxu0 0.0
        %948 = vmatprep.subr.mxu0 0.0
        %949 = vmatpush1.msra.mxu0 0.0
        %950 = vmatprep.subr.mxu0 0.0
        %951 = vmatpush1.msra.mxu0 0.0
        %952 = vmatprep.subr.mxu0 0.0
        %953 = vmatpush1.msra.mxu0 0.0
        %954 = vmatprep.subr.mxu0 0.0
        %955 = vmatpush1.msra.mxu0 0.0
        %956 = vmatprep.subr.mxu0 0.0
        %957 = vmatpush1.msra.mxu0 0.0
        %958 = vmatprep.subr.mxu0 0.0
        %959 = vmatpush1.msra.mxu0 0.0
        %960 = vmatprep.subr.mxu0 0.0
        %961 = vmatpush1.msra.mxu0 0.0
        %962 = vmatprep.subr.mxu0 0.0
        %963 = vmatpush1.msra.mxu0 0.0
        %964 = vmatprep.subr.mxu0 0.0
        %965 = vmatpush1.msra.mxu0 0.0
        %966 = vmatprep.subr.mxu0 0.0
        %967 = vmatpush1.msra.mxu0 0.0
        %968 = vmatprep.subr.mxu0 0.0
        %969 = vmatpush1.msra.mxu0 0.0
        %970 = vmatprep.subr.mxu0 0.0
        %971 = vmatpush1.msra.mxu0 0.0
        %972 = vmatprep.subr.mxu0 0.0
        %973 = vmatpush1.msra.mxu0 0.0
        %974 = vmatprep.subr.mxu0 0.0
        %975 = vmatpush1.msra.mxu0 0.0
        %976 = vmatprep.subr.mxu0 0.0
        %977 = vmatpush1.msra.mxu0 0.0
        %978 = vmatprep.subr.mxu0 0.0
        %979 = vmatpush1.msra.mxu0 0.0
        %980 = vmatprep.subr.mxu0 0.0
        %981 = vmatpush1.msra.mxu0 0.0
        %982 = vmatprep.subr.mxu0 0.0
        %983 = vmatpush1.msra.mxu0 0.0
        %984 = vmatprep.subr.mxu0 0.0
        %985 = vmatpush1.msra.mxu0 0.0
        %986 = vmatprep.subr.mxu0 0.0
        %987 = vmatpush1.msra.mxu0 0.0
        %988 = vmatprep.mubr.f32.mxu0 0.0
        %v989 = vand.u32 %v435, 4294901760
        %990 = vmatmul.mubr.f32.gmra.mrb[0].mxu0 %v989
        %v991 = vpop.f32.mrb[0].mxu0
        %v992 = vadd.f32 %v872, %v991
        %v993 = vpop.f32.mrb[0].mxu0
        %v994 = vadd.f32 %v874, %v993
        %995 = vdwg.mxu0
        %v996 = vand.u32 %v376, 4294901760
        %997 = vmatprep.subr.mxu0 %v996
        %v998 = vand.u32 %v375, 4294901760
        %999 = vmatpush1.msra.mxu0 %v998
        %v1000 = vand.u32 %v378, 4294901760
        %1001 = vmatprep.subr.mxu0 %v1000
        %v1002 = vand.u32 %v377, 4294901760
        %1003 = vmatpush1.msra.mxu0 %v1002
        %v1004 = vand.u32 %v380, 4294901760
        %1005 = vmatprep.subr.mxu0 %v1004
        %v1006 = vand.u32 %v379, 4294901760
        %1007 = vmatpush1.msra.mxu0 %v1006
        %v1008 = vand.u32 %v382, 4294901760
        %1009 = vmatprep.subr.mxu0 %v1008
        %v1010 = vand.u32 %v381, 4294901760
        %1011 = vmatpush1.msra.mxu0 %v1010
        %v1012 = vand.u32 %v384, 4294901760
        %1013 = vmatprep.subr.mxu0 %v1012
        %v1014 = vand.u32 %v383, 4294901760
        %1015 = vmatpush1.msra.mxu0 %v1014
        %v1016 = vand.u32 %v386, 4294901760
        %1017 = vmatprep.subr.mxu0 %v1016
        %v1018 = vand.u32 %v385, 4294901760
        %1019 = vmatpush1.msra.mxu0 %v1018
        %v1020 = vand.u32 %v388, 4294901760
        %1021 = vmatprep.subr.mxu0 %v1020
        %v1022 = vand.u32 %v387, 4294901760
        %1023 = vmatpush1.msra.mxu0 %v1022
        %v1024 = vand.u32 %v390, 4294901760
        %1025 = vmatprep.subr.mxu0 %v1024
        %v1026 = vand.u32 %v389, 4294901760
        %1027 = vmatpush1.msra.mxu0 %v1026
        %1028 = vmatprep.subr.mxu0 0.0
        %1029 = vmatpush1.msra.mxu0 0.0
        %1030 = vmatprep.subr.mxu0 0.0
        %1031 = vmatpush1.msra.mxu0 0.0
        %1032 = vmatprep.subr.mxu0 0.0
        %1033 = vmatpush1.msra.mxu0 0.0
        %1034 = vmatprep.subr.mxu0 0.0
        %1035 = vmatpush1.msra.mxu0 0.0
        %1036 = vmatprep.subr.mxu0 0.0
        %1037 = vmatpush1.msra.mxu0 0.0
        %1038 = vmatprep.subr.mxu0 0.0
        %1039 = vmatpush1.msra.mxu0 0.0
        %1040 = vmatprep.subr.mxu0 0.0
        %1041 = vmatpush1.msra.mxu0 0.0
        %1042 = vmatprep.subr.mxu0 0.0
        %1043 = vmatpush1.msra.mxu0 0.0
        %1044 = vmatprep.subr.mxu0 0.0
        %1045 = vmatpush1.msra.mxu0 0.0
        %1046 = vmatprep.subr.mxu0 0.0
        %1047 = vmatpush1.msra.mxu0 0.0
        %1048 = vmatprep.subr.mxu0 0.0
        %1049 = vmatpush1.msra.mxu0 0.0
        %1050 = vmatprep.subr.mxu0 0.0
        %1051 = vmatpush1.msra.mxu0 0.0
        %1052 = vmatprep.subr.mxu0 0.0
        %1053 = vmatpush1.msra.mxu0 0.0
        %1054 = vmatprep.subr.mxu0 0.0
        %1055 = vmatpush1.msra.mxu0 0.0
        %1056 = vmatprep.subr.mxu0 0.0
        %1057 = vmatpush1.msra.mxu0 0.0
        %1058 = vmatprep.subr.mxu0 0.0
        %1059 = vmatpush1.msra.mxu0 0.0
        %1060 = vmatprep.subr.mxu0 0.0
        %1061 = vmatpush1.msra.mxu0 0.0
        %1062 = vmatprep.subr.mxu0 0.0
        %1063 = vmatpush1.msra.mxu0 0.0
        %1064 = vmatprep.subr.mxu0 0.0
        %1065 = vmatpush1.msra.mxu0 0.0
        %1066 = vmatprep.subr.mxu0 0.0
        %1067 = vmatpush1.msra.mxu0 0.0
        %1068 = vmatprep.subr.mxu0 0.0
        %1069 = vmatpush1.msra.mxu0 0.0
        %1070 = vmatprep.subr.mxu0 0.0
        %1071 = vmatpush1.msra.mxu0 0.0
        %1072 = vmatprep.subr.mxu0 0.0
        %1073 = vmatpush1.msra.mxu0 0.0
        %1074 = vmatprep.subr.mxu0 0.0
        %1075 = vmatpush1.msra.mxu0 0.0
        %1076 = vmatprep.mubr.f32.mxu0 0.0
        %v1077 = vand.u32 %v435, 4294901760
        %1078 = vmatmul.mubr.f32.gmra.mrb[0].mxu0 %v1077
        %v1079 = vpop.f32.mrb[0].mxu0
        %v1080 = vadd.f32 %v992, %v1079
        %v1081 = vpop.f32.mrb[0].mxu0
        %v1082 = vadd.f32 %v994, %v1081
        %1083 = vdwg.mxu0
        %vm1084 = vcmask 1040384
        %v1085 = vsel %vm1084, %v1080, -inf
        %v1086 = vsel %vm1084, %v1082, -inf
        %v1087 = vmax.f32 %v1085, %v1086
        %1088 = vmax.xlane.f32.xlu0 %v1087
        %v1089 = vpop.xlane.xlu0 %1088
        %v1090 = vsub.f32 %v1080, %v1089
        %v1091 = vsub.f32 %v1082, %v1089
        %v1092 = vmul.f32 %v1090, 1.442695
        %v1093 = vpow.pop %v1092
        %v1094 = vmul.f32 %v1091, 1.442695
        %v1095 = vpow.pop %v1094
        %v1096 = vsel %vm1084, %v1093, 0.0
        %v1097 = vsel %vm1084, %v1095, 0.0
        %v1098 = vadd.f32 %v1096, %v1097
        %1099 = vadd.xlane.f32.xlu0 %v1098
        %v1100 = vpop.xlane.xlu0 %1099
        %v1101 = vlaneseq
        %v1102 = vshrl.u32 %v1101, 7
        %v1103 = vsub.s32 0, %v1102
        %v1104 = vrot.slane %v1093, %v1103
        %v1105 = vlaneseq
        %v1106 = vshrl.u32 %v1105, 7
        %v1107 = vsub.s32 0, %v1106
        %v1108 = vrot.slane %v1095, %v1107
        %v1109 = vmul.f32 %v375, %v1104
        %v1110 = vmul.f32 %v376, %v1108
        %v1111 = vmul.f32 %v377, %v1104
        %v1112 = vmul.f32 %v378, %v1108
        %v1113 = vmul.f32 %v379, %v1104
        %v1114 = vmul.f32 %v380, %v1108
        %v1115 = vmul.f32 %v381, %v1104
        %v1116 = vmul.f32 %v382, %v1108
        %v1117 = vmul.f32 %v383, %v1104
        %v1118 = vmul.f32 %v384, %v1108
        %v1119 = vmul.f32 %v385, %v1104
        %v1120 = vmul.f32 %v386, %v1108
        %v1121 = vmul.f32 %v387, %v1104
        %v1122 = vmul.f32 %v388, %v1108
        %v1123 = vmul.f32 %v389, %v1104
        %v1124 = vmul.f32 %v390, %v1108
        %v1125 = vadd.f32 %v1109, %v1110
        %1126 = vadd.xlane.f32.xlu0 %v1125
        %v1127 = vpop.xlane.xlu0 %1126
        %v1128 = vadd.f32 %v1111, %v1112
        %1129 = vadd.xlane.f32.xlu0 %v1128
        %v1130 = vpop.xlane.xlu0 %1129
        %v1131 = vadd.f32 %v1113, %v1114
        %1132 = vadd.xlane.f32.xlu0 %v1131
        %v1133 = vpop.xlane.xlu0 %1132
        %v1134 = vadd.f32 %v1115, %v1116
        %1135 = vadd.xlane.f32.xlu0 %v1134
        %v1136 = vpop.xlane.xlu0 %1135
        %v1137 = vadd.f32 %v1117, %v1118
        %1138 = vadd.xlane.f32.xlu0 %v1137
        %v1139 = vpop.xlane.xlu0 %1138
        %v1140 = vadd.f32 %v1119, %v1120
        %1141 = vadd.xlane.f32.xlu0 %v1140
        %v1142 = vpop.xlane.xlu0 %1141
        %v1143 = vadd.f32 %v1121, %v1122
        %1144 = vadd.xlane.f32.xlu0 %v1143
        %v1145 = vpop.xlane.xlu0 %1144
        %v1146 = vadd.f32 %v1123, %v1124
        %1147 = vadd.xlane.f32.xlu0 %v1146
        %v1148 = vpop.xlane.xlu0 %1147
        %v1149 = vlaneseq
        %v1150 = vshrl.u32 %v1149, 7
        %v1151 = vsub.s32 0, %v1150
        %v1152 = vrot.slane %v1100, %v1151
        %v1153 = vrcp.pop %v1152
        %v1154 = vmul.f32 %v1127, %v1153
        %v1155 = vmul.f32 %v1130, %v1153
        %v1156 = vmul.f32 %v1133, %v1153
        %v1157 = vmul.f32 %v1136, %v1153
        %v1158 = vmul.f32 %v1139, %v1153
        %v1159 = vmul.f32 %v1142, %v1153
        %v1160 = vmul.f32 %v1145, %v1153
        %v1161 = vmul.f32 %v1148, %v1153
        %v1162 = vld [vmem:[#allocation4] sm:$0xff]
        %v1163 = vld [vmem:[#allocation4 + $0x8] sm:$0xff]
        %v1164 = vld [vmem:[%s4] sm:$0xff]
        %v1165 = vld [vmem:[%s4 + $0x8] sm:$0xff]
        %v1166 = vld [vmem:[%s5] sm:$0xff]
        %v1167 = vld [vmem:[%s5 + $0x8] sm:$0xff]
        %v1168 = vld [vmem:[%s6] sm:$0xff]
        %v1169 = vld [vmem:[%s6 + $0x8] sm:$0xff]
        %v1170 = vld [vmem:[%s7] sm:$0xff]
        %v1171 = vld [vmem:[%s7 + $0x8] sm:$0xff]
        %v1172 = vld [vmem:[%s7 + $0x10] sm:$0xff]
        %v1173 = vld [vmem:[%s7 + $0x18] sm:$0xff]
        %v1174 = vld [vmem:[%s7 + $0x20] sm:$0xff]
        %v1175 = vld [vmem:[%s7 + $0x28] sm:$0xff]
        %v1176 = vld [vmem:[%s7 + $0x30] sm:$0xff]
        %v1177 = vld [vmem:[%s7 + $0x38] sm:$0xff]
        %v1178 = vld [vmem:[%s8] sm:$0xff]
        %v1179 = vld [vmem:[%s8 + $0x8] sm:$0xff]
        %v1180 = vld [vmem:[%s8 + $0x10] sm:$0xff]
        %v1181 = vld [vmem:[%s8 + $0x18] sm:$0xff]
        %v1182 = vld [vmem:[%s8 + $0x20] sm:$0xff]
        %v1183 = vld [vmem:[%s8 + $0x28] sm:$0xff]
        %v1184 = vld [vmem:[%s8 + $0x30] sm:$0xff]
        %v1185 = vld [vmem:[%s8 + $0x38] sm:$0xff]
        %s1186 = sld [smem:[#allocation3]]
        %v1188 = vsel %vm433, %v1162, 0
        %v1191 = vsel %vm433, %v1163, 0
        %1193 = vmatprep.subr.mxu0 0.0
        %v1194 = vand.u32 %v1154, 4294901760
        %1195 = vmatpush1.msra.mxu0 %v1194
        %1196 = vmatprep.subr.mxu0 0.0
        %v1197 = vand.u32 %v1155, 4294901760
        %1198 = vmatpush1.msra.mxu0 %v1197
        %1199 = vmatprep.subr.mxu0 0.0
        %v1200 = vand.u32 %v1156, 4294901760
        %1201 = vmatpush1.msra.mxu0 %v1200
        %1202 = vmatprep.subr.mxu0 0.0
        %v1203 = vand.u32 %v1157, 4294901760
        %1204 = vmatpush1.msra.mxu0 %v1203
        %1205 = vmatprep.subr.mxu0 0.0
        %v1206 = vand.u32 %v1158, 4294901760
        %1207 = vmatpush1.msra.mxu0 %v1206
        %1208 = vmatprep.subr.mxu0 0.0
        %v1209 = vand.u32 %v1159, 4294901760
        %1210 = vmatpush1.msra.mxu0 %v1209
        %1211 = vmatprep.subr.mxu0 0.0
        %v1212 = vand.u32 %v1160, 4294901760
        %1213 = vmatpush1.msra.mxu0 %v1212
        %1214 = vmatprep.subr.mxu0 0.0
        %v1215 = vand.u32 %v1161, 4294901760
        %1216 = vmatpush1.msra.mxu0 %v1215
        %1217 = vmatprep.subr.mxu0 0.0
        %1218 = vmatpush1.msra.mxu0 0.0
        %1219 = vmatprep.subr.mxu0 0.0
        %1220 = vmatpush1.msra.mxu0 0.0
        %1221 = vmatprep.subr.mxu0 0.0
        %1222 = vmatpush1.msra.mxu0 0.0
        %1223 = vmatprep.subr.mxu0 0.0
        %1224 = vmatpush1.msra.mxu0 0.0
        %1225 = vmatprep.subr.mxu0 0.0
        %1226 = vmatpush1.msra.mxu0 0.0
        %1227 = vmatprep.subr.mxu0 0.0
        %1228 = vmatpush1.msra.mxu0 0.0
        %1229 = vmatprep.subr.mxu0 0.0
        %1230 = vmatpush1.msra.mxu0 0.0
        %1231 = vmatprep.subr.mxu0 0.0
        %1232 = vmatpush1.msra.mxu0 0.0
        %1233 = vmatprep.subr.mxu0 0.0
        %1234 = vmatpush1.msra.mxu0 0.0
        %1235 = vmatprep.subr.mxu0 0.0
        %1236 = vmatpush1.msra.mxu0 0.0
        %1237 = vmatprep.subr.mxu0 0.0
        %1238 = vmatpush1.msra.mxu0 0.0
        %1239 = vmatprep.subr.mxu0 0.0
        %1240 = vmatpush1.msra.mxu0 0.0
        %1241 = vmatprep.subr.mxu0 0.0
        %1242 = vmatpush1.msra.mxu0 0.0
        %1243 = vmatprep.subr.mxu0 0.0
        %1244 = vmatpush1.msra.mxu0 0.0
        %1245 = vmatprep.subr.mxu0 0.0
        %1246 = vmatpush1.msra.mxu0 0.0
        %1247 = vmatprep.subr.mxu0 0.0
        %1248 = vmatpush1.msra.mxu0 0.0
        %1249 = vmatprep.subr.mxu0 0.0
        %1250 = vmatpush1.msra.mxu0 0.0
        %1251 = vmatprep.subr.mxu0 0.0
        %1252 = vmatpush1.msra.mxu0 0.0
        %1253 = vmatprep.subr.mxu0 0.0
        %1254 = vmatpush1.msra.mxu0 0.0
        %1255 = vmatprep.subr.mxu0 0.0
        %1256 = vmatpush1.msra.mxu0 0.0
        %1257 = vmatprep.subr.mxu0 0.0
        %1258 = vmatpush1.msra.mxu0 0.0
        %1259 = vmatprep.subr.mxu0 0.0
        %1260 = vmatpush1.msra.mxu0 0.0
        %1261 = vmatprep.subr.mxu0 0.0
        %1262 = vmatpush1.msra.mxu0 0.0
        %1263 = vmatprep.subr.mxu0 0.0
        %1264 = vmatpush1.msra.mxu0 0.0
        %1265 = vmatprep.mubr.f32.mxu0 0.0
        %v1266 = vand.u32 %v1188, 4294901760
        %v1267 = vsub.f32 %v1188, %v1266
        %v1268 = vand.u32 %v1267, 4294901760
        %v1269 = vsub.f32 %v1267, %v1268
        %v1270 = vand.u32 %v1269, 4294901760
        %1271 = vmatmul.mubr.f32.gmra.mrb[0].mxu0 %v1270
        %v1272 = vpop.f32.mrb[0].mxu0
        %v1273 = vadd.f32 %v1164, %v1272
        %v1274 = vpop.f32.mrb[0].mxu0
        %1275 = vmatprep.mubr.f32.mxu0 0.0
        %v1276 = vand.u32 %v1191, 4294901760
        %v1277 = vsub.f32 %v1191, %v1276
        %v1278 = vand.u32 %v1277, 4294901760
        %v1279 = vsub.f32 %v1277, %v1278
        %v1280 = vand.u32 %v1279, 4294901760
        %1281 = vmatmul.mubr.f32.gmra.mrb[0].mxu0 %v1280
        %v1282 = vpop.f32.mrb[0].mxu0
        %v1283 = vadd.f32 %v1165, %v1282
        %v1284 = vpop.f32.mrb[0].mxu0
        %1285 = vdwg.mxu0
        %1286 = vmatprep.subr.mxu0 0.0
        %v1287 = vand.u32 %v1154, 4294901760
        %v1288 = vsub.f32 %v1154, %v1287
        %v1289 = vand.u32 %v1288, 4294901760
        %v1290 = vsub.f32 %v1288, %v1289
        %v1291 = vand.u32 %v1290, 4294901760
        %1292 = vmatpush1.msra.mxu0 %v1291
        %1293 = vmatprep.subr.mxu0 0.0
        %v1294 = vand.u32 %v1155, 4294901760
        %v1295 = vsub.f32 %v1155, %v1294
        %v1296 = vand.u32 %v1295, 4294901760
        %v1297 = vsub.f32 %v1295, %v1296
        %v1298 = vand.u32 %v1297, 4294901760
        %1299 = vmatpush1.msra.mxu0 %v1298
        %1300 = vmatprep.subr.mxu0 0.0
        %v1301 = vand.u32 %v1156, 4294901760
        %v1302 = vsub.f32 %v1156, %v1301
        %v1303 = vand.u32 %v1302, 4294901760
        %v1304 = vsub.f32 %v1302, %v1303
        %v1305 = vand.u32 %v1304, 4294901760
        %1306 = vmatpush1.msra.mxu0 %v1305
        %1307 = vmatprep.subr.mxu0 0.0
        %v1308 = vand.u32 %v1157, 4294901760
        %v1309 = vsub.f32 %v1157, %v1308
        %v1310 = vand.u32 %v1309, 4294901760
        %v1311 = vsub.f32 %v1309, %v1310
        %v1312 = vand.u32 %v1311, 4294901760
        %1313 = vmatpush1.msra.mxu0 %v1312
        %1314 = vmatprep.subr.mxu0 0.0
        %v1315 = vand.u32 %v1158, 4294901760
        %v1316 = vsub.f32 %v1158, %v1315
        %v1317 = vand.u32 %v1316, 4294901760
        %v1318 = vsub.f32 %v1316, %v1317
        %v1319 = vand.u32 %v1318, 4294901760
        %1320 = vmatpush1.msra.mxu0 %v1319
        %1321 = vmatprep.subr.mxu0 0.0
        %v1322 = vand.u32 %v1159, 4294901760
        %v1323 = vsub.f32 %v1159, %v1322
        %v1324 = vand.u32 %v1323, 4294901760
        %v1325 = vsub.f32 %v1323, %v1324
        %v1326 = vand.u32 %v1325, 4294901760
        %1327 = vmatpush1.msra.mxu0 %v1326
        %1328 = vmatprep.subr.mxu0 0.0
        %v1329 = vand.u32 %v1160, 4294901760
        %v1330 = vsub.f32 %v1160, %v1329
        %v1331 = vand.u32 %v1330, 4294901760
        %v1332 = vsub.f32 %v1330, %v1331
        %v1333 = vand.u32 %v1332, 4294901760
        %1334 = vmatpush1.msra.mxu0 %v1333
        %1335 = vmatprep.subr.mxu0 0.0
        %v1336 = vand.u32 %v1161, 4294901760
        %v1337 = vsub.f32 %v1161, %v1336
        %v1338 = vand.u32 %v1337, 4294901760
        %v1339 = vsub.f32 %v1337, %v1338
        %v1340 = vand.u32 %v1339, 4294901760
        %1341 = vmatpush1.msra.mxu0 %v1340
        %1342 = vmatprep.subr.mxu0 0.0
        %1343 = vmatpush1.msra.mxu0 0.0
        %1344 = vmatprep.subr.mxu0 0.0
        %1345 = vmatpush1.msra.mxu0 0.0
        %1346 = vmatprep.subr.mxu0 0.0
        %1347 = vmatpush1.msra.mxu0 0.0
        %1348 = vmatprep.subr.mxu0 0.0
        %1349 = vmatpush1.msra.mxu0 0.0
        %1350 = vmatprep.subr.mxu0 0.0
        %1351 = vmatpush1.msra.mxu0 0.0
        %1352 = vmatprep.subr.mxu0 0.0
        %1353 = vmatpush1.msra.mxu0 0.0
        %1354 = vmatprep.subr.mxu0 0.0
        %1355 = vmatpush1.msra.mxu0 0.0
        %1356 = vmatprep.subr.mxu0 0.0
        %1357 = vmatpush1.msra.mxu0 0.0
        %1358 = vmatprep.subr.mxu0 0.0
        %1359 = vmatpush1.msra.mxu0 0.0
        %1360 = vmatprep.subr.mxu0 0.0
        %1361 = vmatpush1.msra.mxu0 0.0
        %1362 = vmatprep.subr.mxu0 0.0
        %1363 = vmatpush1.msra.mxu0 0.0
        %1364 = vmatprep.subr.mxu0 0.0
        %1365 = vmatpush1.msra.mxu0 0.0
        %1366 = vmatprep.subr.mxu0 0.0
        %1367 = vmatpush1.msra.mxu0 0.0
        %1368 = vmatprep.subr.mxu0 0.0
        %1369 = vmatpush1.msra.mxu0 0.0
        %1370 = vmatprep.subr.mxu0 0.0
        %1371 = vmatpush1.msra.mxu0 0.0
        %1372 = vmatprep.subr.mxu0 0.0
        %1373 = vmatpush1.msra.mxu0 0.0
        %1374 = vmatprep.subr.mxu0 0.0
        %1375 = vmatpush1.msra.mxu0 0.0
        %1376 = vmatprep.subr.mxu0 0.0
        %1377 = vmatpush1.msra.mxu0 0.0
        %1378 = vmatprep.subr.mxu0 0.0
        %1379 = vmatpush1.msra.mxu0 0.0
        %1380 = vmatprep.subr.mxu0 0.0
        %1381 = vmatpush1.msra.mxu0 0.0
        %1382 = vmatprep.subr.mxu0 0.0
        %1383 = vmatpush1.msra.mxu0 0.0
        %1384 = vmatprep.subr.mxu0 0.0
        %1385 = vmatpush1.msra.mxu0 0.0
        %1386 = vmatprep.subr.mxu0 0.0
        %1387 = vmatpush1.msra.mxu0 0.0
        %1388 = vmatprep.subr.mxu0 0.0
        %1389 = vmatpush1.msra.mxu0 0.0
        %1390 = vmatprep.mubr.f32.mxu0 0.0
        %v1391 = vand.u32 %v1188, 4294901760
        %1392 = vmatmul.mubr.f32.gmra.mrb[0].mxu0 %v1391
        %v1393 = vpop.f32.mrb[0].mxu0
        %v1394 = vadd.f32 %v1273, %v1393
        %v1395 = vpop.f32.mrb[0].mxu0
        %1396 = vmatprep.mubr.f32.mxu0 0.0
        %v1397 = vand.u32 %v1191, 4294901760
        %1398 = vmatmul.mubr.f32.gmra.mrb[0].mxu0 %v1397
        %v1399 = vpop.f32.mrb[0].mxu0
        %v1400 = vadd.f32 %v1283, %v1399
        %v1401 = vpop.f32.mrb[0].mxu0
        %1402 = vdwg.mxu0
        %1403 = vmatprep.subr.mxu0 0.0
        %v1404 = vand.u32 %v1154, 4294901760
        %v1405 = vsub.f32 %v1154, %v1404
        %1406 = vmatpush1.msra.mxu0 %v1405
        %1407 = vmatprep.subr.mxu0 0.0
        %v1408 = vand.u32 %v1155, 4294901760
        %v1409 = vsub.f32 %v1155, %v1408
        %1410 = vmatpush1.msra.mxu0 %v1409
        %1411 = vmatprep.subr.mxu0 0.0
        %v1412 = vand.u32 %v1156, 4294901760
        %v1413 = vsub.f32 %v1156, %v1412
        %1414 = vmatpush1.msra.mxu0 %v1413
        %1415 = vmatprep.subr.mxu0 0.0
        %v1416 = vand.u32 %v1157, 4294901760
        %v1417 = vsub.f32 %v1157, %v1416
        %1418 = vmatpush1.msra.mxu0 %v1417
        %1419 = vmatprep.subr.mxu0 0.0
        %v1420 = vand.u32 %v1158, 4294901760
        %v1421 = vsub.f32 %v1158, %v1420
        %1422 = vmatpush1.msra.mxu0 %v1421
        %1423 = vmatprep.subr.mxu0 0.0
        %v1424 = vand.u32 %v1159, 4294901760
        %v1425 = vsub.f32 %v1159, %v1424
        %1426 = vmatpush1.msra.mxu0 %v1425
        %1427 = vmatprep.subr.mxu0 0.0
        %v1428 = vand.u32 %v1160, 4294901760
        %v1429 = vsub.f32 %v1160, %v1428
        %1430 = vmatpush1.msra.mxu0 %v1429
        %1431 = vmatprep.subr.mxu0 0.0
        %v1432 = vand.u32 %v1161, 4294901760
        %v1433 = vsub.f32 %v1161, %v1432
        %1434 = vmatpush1.msra.mxu0 %v1433
        %1435 = vmatprep.subr.mxu0 0.0
        %1436 = vmatpush1.msra.mxu0 0.0
        %1437 = vmatprep.subr.mxu0 0.0
        %1438 = vmatpush1.msra.mxu0 0.0
        %1439 = vmatprep.subr.mxu0 0.0
        %1440 = vmatpush1.msra.mxu0 0.0
        %1441 = vmatprep.subr.mxu0 0.0
        %1442 = vmatpush1.msra.mxu0 0.0
        %1443 = vmatprep.subr.mxu0 0.0
        %1444 = vmatpush1.msra.mxu0 0.0
        %1445 = vmatprep.subr.mxu0 0.0
        %1446 = vmatpush1.msra.mxu0 0.0
        %1447 = vmatprep.subr.mxu0 0.0
        %1448 = vmatpush1.msra.mxu0 0.0
        %1449 = vmatprep.subr.mxu0 0.0
        %1450 = vmatpush1.msra.mxu0 0.0
        %1451 = vmatprep.subr.mxu0 0.0
        %1452 = vmatpush1.msra.mxu0 0.0
        %1453 = vmatprep.subr.mxu0 0.0
        %1454 = vmatpush1.msra.mxu0 0.0
        %1455 = vmatprep.subr.mxu0 0.0
        %1456 = vmatpush1.msra.mxu0 0.0
        %1457 = vmatprep.subr.mxu0 0.0
        %1458 = vmatpush1.msra.mxu0 0.0
        %1459 = vmatprep.subr.mxu0 0.0
        %1460 = vmatpush1.msra.mxu0 0.0
        %1461 = vmatprep.subr.mxu0 0.0
        %1462 = vmatpush1.msra.mxu0 0.0
        %1463 = vmatprep.subr.mxu0 0.0
        %1464 = vmatpush1.msra.mxu0 0.0
        %1465 = vmatprep.subr.mxu0 0.0
        %1466 = vmatpush1.msra.mxu0 0.0
        %1467 = vmatprep.subr.mxu0 0.0
        %1468 = vmatpush1.msra.mxu0 0.0
        %1469 = vmatprep.subr.mxu0 0.0
        %1470 = vmatpush1.msra.mxu0 0.0
        %1471 = vmatprep.subr.mxu0 0.0
        %1472 = vmatpush1.msra.mxu0 0.0
        %1473 = vmatprep.subr.mxu0 0.0
        %1474 = vmatpush1.msra.mxu0 0.0
        %1475 = vmatprep.subr.mxu0 0.0
        %1476 = vmatpush1.msra.mxu0 0.0
        %1477 = vmatprep.subr.mxu0 0.0
        %1478 = vmatpush1.msra.mxu0 0.0
        %1479 = vmatprep.subr.mxu0 0.0
        %1480 = vmatpush1.msra.mxu0 0.0
        %1481 = vmatprep.subr.mxu0 0.0
        %1482 = vmatpush1.msra.mxu0 0.0
        %1483 = vmatprep.mubr.f32.mxu0 0.0
        %v1484 = vand.u32 %v1188, 4294901760
        %v1485 = vsub.f32 %v1188, %v1484
        %1486 = vmatmul.mubr.f32.gmra.mrb[0].mxu0 %v1485
        %v1487 = vpop.f32.mrb[0].mxu0
        %v1488 = vadd.f32 %v1394, %v1487
        %v1489 = vpop.f32.mrb[0].mxu0
        %1490 = vmatprep.mubr.f32.mxu0 0.0
        %v1491 = vand.u32 %v1191, 4294901760
        %v1492 = vsub.f32 %v1191, %v1491
        %1493 = vmatmul.mubr.f32.gmra.mrb[0].mxu0 %v1492
        %v1494 = vpop.f32.mrb[0].mxu0
        %v1495 = vadd.f32 %v1400, %v1494
        %v1496 = vpop.f32.mrb[0].mxu0
        %1497 = vdwg.mxu0
        %1498 = vmatprep.subr.mxu0 0.0
        %v1499 = vand.u32 %v1154, 4294901760
        %1500 = vmatpush1.msra.mxu0 %v1499
        %1501 = vmatprep.subr.mxu0 0.0
        %v1502 = vand.u32 %v1155, 4294901760
        %1503 = vmatpush1.msra.mxu0 %v1502
        %1504 = vmatprep.subr.mxu0 0.0
        %v1505 = vand.u32 %v1156, 4294901760
        %1506 = vmatpush1.msra.mxu0 %v1505
        %1507 = vmatprep.subr.mxu0 0.0
        %v1508 = vand.u32 %v1157, 4294901760
        %1509 = vmatpush1.msra.mxu0 %v1508
        %1510 = vmatprep.subr.mxu0 0.0
        %v1511 = vand.u32 %v1158, 4294901760
        %1512 = vmatpush1.msra.mxu0 %v1511
        %1513 = vmatprep.subr.mxu0 0.0
        %v1514 = vand.u32 %v1159, 4294901760
        %1515 = vmatpush1.msra.mxu0 %v1514
        %1516 = vmatprep.subr.mxu0 0.0
        %v1517 = vand.u32 %v1160, 4294901760
        %1518 = vmatpush1.msra.mxu0 %v1517
        %1519 = vmatprep.subr.mxu0 0.0
        %v1520 = vand.u32 %v1161, 4294901760
        %1521 = vmatpush1.msra.mxu0 %v1520
        %1522 = vmatprep.subr.mxu0 0.0
        %1523 = vmatpush1.msra.mxu0 0.0
        %1524 = vmatprep.subr.mxu0 0.0
        %1525 = vmatpush1.msra.mxu0 0.0
        %1526 = vmatprep.subr.mxu0 0.0
        %1527 = vmatpush1.msra.mxu0 0.0
        %1528 = vmatprep.subr.mxu0 0.0
        %1529 = vmatpush1.msra.mxu0 0.0
        %1530 = vmatprep.subr.mxu0 0.0
        %1531 = vmatpush1.msra.mxu0 0.0
        %1532 = vmatprep.subr.mxu0 0.0
        %1533 = vmatpush1.msra.mxu0 0.0
        %1534 = vmatprep.subr.mxu0 0.0
        %1535 = vmatpush1.msra.mxu0 0.0
        %1536 = vmatprep.subr.mxu0 0.0
        %1537 = vmatpush1.msra.mxu0 0.0
        %1538 = vmatprep.subr.mxu0 0.0
        %1539 = vmatpush1.msra.mxu0 0.0
        %1540 = vmatprep.subr.mxu0 0.0
        %1541 = vmatpush1.msra.mxu0 0.0
        %1542 = vmatprep.subr.mxu0 0.0
        %1543 = vmatpush1.msra.mxu0 0.0
        %1544 = vmatprep.subr.mxu0 0.0
        %1545 = vmatpush1.msra.mxu0 0.0
        %1546 = vmatprep.subr.mxu0 0.0
        %1547 = vmatpush1.msra.mxu0 0.0
        %1548 = vmatprep.subr.mxu0 0.0
        %1549 = vmatpush1.msra.mxu0 0.0
        %1550 = vmatprep.subr.mxu0 0.0
        %1551 = vmatpush1.msra.mxu0 0.0
        %1552 = vmatprep.subr.mxu0 0.0
        %1553 = vmatpush1.msra.mxu0 0.0
        %1554 = vmatprep.subr.mxu0 0.0
        %1555 = vmatpush1.msra.mxu0 0.0
        %1556 = vmatprep.subr.mxu0 0.0
        %1557 = vmatpush1.msra.mxu0 0.0
        %1558 = vmatprep.subr.mxu0 0.0
        %1559 = vmatpush1.msra.mxu0 0.0
        %1560 = vmatprep.subr.mxu0 0.0
        %1561 = vmatpush1.msra.mxu0 0.0
        %1562 = vmatprep.subr.mxu0 0.0
        %1563 = vmatpush1.msra.mxu0 0.0
        %1564 = vmatprep.subr.mxu0 0.0
        %1565 = vmatpush1.msra.mxu0 0.0
        %1566 = vmatprep.subr.mxu0 0.0
        %1567 = vmatpush1.msra.mxu0 0.0
        %1568 = vmatprep.subr.mxu0 0.0
        %1569 = vmatpush1.msra.mxu0 0.0
        %1570 = vmatprep.mubr.f32.mxu0 0.0
        %v1571 = vand.u32 %v1188, 4294901760
        %v1572 = vsub.f32 %v1188, %v1571
        %v1573 = vand.u32 %v1572, 4294901760
        %1574 = vmatmul.mubr.f32.gmra.mrb[0].mxu0 %v1573
        %v1575 = vpop.f32.mrb[0].mxu0
        %v1576 = vadd.f32 %v1488, %v1575
        %v1577 = vpop.f32.mrb[0].mxu0
        %1578 = vmatprep.mubr.f32.mxu0 0.0
        %v1579 = vand.u32 %v1191, 4294901760
        %v1580 = vsub.f32 %v1191, %v1579
        %v1581 = vand.u32 %v1580, 4294901760
        %1582 = vmatmul.mubr.f32.gmra.mrb[0].mxu0 %v1581
        %v1583 = vpop.f32.mrb[0].mxu0
        %v1584 = vadd.f32 %v1495, %v1583
        %v1585 = vpop.f32.mrb[0].mxu0
        %1586 = vdwg.mxu0
        %1587 = vmatprep.subr.mxu0 0.0
        %v1588 = vand.u32 %v1154, 4294901760
        %v1589 = vsub.f32 %v1154, %v1588
        %v1590 = vand.u32 %v1589, 4294901760
        %1591 = vmatpush1.msra.mxu0 %v1590
        %1592 = vmatprep.subr.mxu0 0.0
        %v1593 = vand.u32 %v1155, 4294901760
        %v1594 = vsub.f32 %v1155, %v1593
        %v1595 = vand.u32 %v1594, 4294901760
        %1596 = vmatpush1.msra.mxu0 %v1595
        %1597 = vmatprep.subr.mxu0 0.0
        %v1598 = vand.u32 %v1156, 4294901760
        %v1599 = vsub.f32 %v1156, %v1598
        %v1600 = vand.u32 %v1599, 4294901760
        %1601 = vmatpush1.msra.mxu0 %v1600
        %1602 = vmatprep.subr.mxu0 0.0
        %v1603 = vand.u32 %v1157, 4294901760
        %v1604 = vsub.f32 %v1157, %v1603
        %v1605 = vand.u32 %v1604, 4294901760
        %1606 = vmatpush1.msra.mxu0 %v1605
        %1607 = vmatprep.subr.mxu0 0.0
        %v1608 = vand.u32 %v1158, 4294901760
        %v1609 = vsub.f32 %v1158, %v1608
        %v1610 = vand.u32 %v1609, 4294901760
        %1611 = vmatpush1.msra.mxu0 %v1610
        %1612 = vmatprep.subr.mxu0 0.0
        %v1613 = vand.u32 %v1159, 4294901760
        %v1614 = vsub.f32 %v1159, %v1613
        %v1615 = vand.u32 %v1614, 4294901760
        %1616 = vmatpush1.msra.mxu0 %v1615
        %1617 = vmatprep.subr.mxu0 0.0
        %v1618 = vand.u32 %v1160, 4294901760
        %v1619 = vsub.f32 %v1160, %v1618
        %v1620 = vand.u32 %v1619, 4294901760
        %1621 = vmatpush1.msra.mxu0 %v1620
        %1622 = vmatprep.subr.mxu0 0.0
        %v1623 = vand.u32 %v1161, 4294901760
        %v1624 = vsub.f32 %v1161, %v1623
        %v1625 = vand.u32 %v1624, 4294901760
        %1626 = vmatpush1.msra.mxu0 %v1625
        %1627 = vmatprep.subr.mxu0 0.0
        %1628 = vmatpush1.msra.mxu0 0.0
        %1629 = vmatprep.subr.mxu0 0.0
        %1630 = vmatpush1.msra.mxu0 0.0
        %1631 = vmatprep.subr.mxu0 0.0
        %1632 = vmatpush1.msra.mxu0 0.0
        %1633 = vmatprep.subr.mxu0 0.0
        %1634 = vmatpush1.msra.mxu0 0.0
        %1635 = vmatprep.subr.mxu0 0.0
        %1636 = vmatpush1.msra.mxu0 0.0
        %1637 = vmatprep.subr.mxu0 0.0
        %1638 = vmatpush1.msra.mxu0 0.0
        %1639 = vmatprep.subr.mxu0 0.0
        %1640 = vmatpush1.msra.mxu0 0.0
        %1641 = vmatprep.subr.mxu0 0.0
        %1642 = vmatpush1.msra.mxu0 0.0
        %1643 = vmatprep.subr.mxu0 0.0
        %1644 = vmatpush1.msra.mxu0 0.0
        %1645 = vmatprep.subr.mxu0 0.0
        %1646 = vmatpush1.msra.mxu0 0.0
        %1647 = vmatprep.subr.mxu0 0.0
        %1648 = vmatpush1.msra.mxu0 0.0
        %1649 = vmatprep.subr.mxu0 0.0
        %1650 = vmatpush1.msra.mxu0 0.0
        %1651 = vmatprep.subr.mxu0 0.0
        %1652 = vmatpush1.msra.mxu0 0.0
        %1653 = vmatprep.subr.mxu0 0.0
        %1654 = vmatpush1.msra.mxu0 0.0
        %1655 = vmatprep.subr.mxu0 0.0
        %1656 = vmatpush1.msra.mxu0 0.0
        %1657 = vmatprep.subr.mxu0 0.0
        %1658 = vmatpush1.msra.mxu0 0.0
        %1659 = vmatprep.subr.mxu0 0.0
        %1660 = vmatpush1.msra.mxu0 0.0
        %1661 = vmatprep.subr.mxu0 0.0
        %1662 = vmatpush1.msra.mxu0 0.0
        %1663 = vmatprep.subr.mxu0 0.0
        %1664 = vmatpush1.msra.mxu0 0.0
        %1665 = vmatprep.subr.mxu0 0.0
        %1666 = vmatpush1.msra.mxu0 0.0
        %1667 = vmatprep.subr.mxu0 0.0
        %1668 = vmatpush1.msra.mxu0 0.0
        %1669 = vmatprep.subr.mxu0 0.0
        %1670 = vmatpush1.msra.mxu0 0.0
        %1671 = vmatprep.subr.mxu0 0.0
        %1672 = vmatpush1.msra.mxu0 0.0
        %1673 = vmatprep.subr.mxu0 0.0
        %1674 = vmatpush1.msra.mxu0 0.0
        %1675 = vmatprep.mubr.f32.mxu0 0.0
        %v1676 = vand.u32 %v1188, 4294901760
        %1677 = vmatmul.mubr.f32.gmra.mrb[0].mxu0 %v1676
        %v1678 = vpop.f32.mrb[0].mxu0
        %v1679 = vadd.f32 %v1576, %v1678
        %v1680 = vpop.f32.mrb[0].mxu0
        %1681 = vmatprep.mubr.f32.mxu0 0.0
        %v1682 = vand.u32 %v1191, 4294901760
        %1683 = vmatmul.mubr.f32.gmra.mrb[0].mxu0 %v1682
        %v1684 = vpop.f32.mrb[0].mxu0
        %v1685 = vadd.f32 %v1584, %v1684
        %v1686 = vpop.f32.mrb[0].mxu0
        %1687 = vdwg.mxu0
        %1688 = vmatprep.subr.mxu0 0.0
        %v1689 = vand.u32 %v1154, 4294901760
        %1690 = vmatpush1.msra.mxu0 %v1689
        %1691 = vmatprep.subr.mxu0 0.0
        %v1692 = vand.u32 %v1155, 4294901760
        %1693 = vmatpush1.msra.mxu0 %v1692
        %1694 = vmatprep.subr.mxu0 0.0
        %v1695 = vand.u32 %v1156, 4294901760
        %1696 = vmatpush1.msra.mxu0 %v1695
        %1697 = vmatprep.subr.mxu0 0.0
        %v1698 = vand.u32 %v1157, 4294901760
        %1699 = vmatpush1.msra.mxu0 %v1698
        %1700 = vmatprep.subr.mxu0 0.0
        %v1701 = vand.u32 %v1158, 4294901760
        %1702 = vmatpush1.msra.mxu0 %v1701
        %1703 = vmatprep.subr.mxu0 0.0
        %v1704 = vand.u32 %v1159, 4294901760
        %1705 = vmatpush1.msra.mxu0 %v1704
        %1706 = vmatprep.subr.mxu0 0.0
        %v1707 = vand.u32 %v1160, 4294901760
        %1708 = vmatpush1.msra.mxu0 %v1707
        %1709 = vmatprep.subr.mxu0 0.0
        %v1710 = vand.u32 %v1161, 4294901760
        %1711 = vmatpush1.msra.mxu0 %v1710
        %1712 = vmatprep.subr.mxu0 0.0
        %1713 = vmatpush1.msra.mxu0 0.0
        %1714 = vmatprep.subr.mxu0 0.0
        %1715 = vmatpush1.msra.mxu0 0.0
        %1716 = vmatprep.subr.mxu0 0.0
        %1717 = vmatpush1.msra.mxu0 0.0
        %1718 = vmatprep.subr.mxu0 0.0
        %1719 = vmatpush1.msra.mxu0 0.0
        %1720 = vmatprep.subr.mxu0 0.0
        %1721 = vmatpush1.msra.mxu0 0.0
        %1722 = vmatprep.subr.mxu0 0.0
        %1723 = vmatpush1.msra.mxu0 0.0
        %1724 = vmatprep.subr.mxu0 0.0
        %1725 = vmatpush1.msra.mxu0 0.0
        %1726 = vmatprep.subr.mxu0 0.0
        %1727 = vmatpush1.msra.mxu0 0.0
        %1728 = vmatprep.subr.mxu0 0.0
        %1729 = vmatpush1.msra.mxu0 0.0
        %1730 = vmatprep.subr.mxu0 0.0
        %1731 = vmatpush1.msra.mxu0 0.0
        %1732 = vmatprep.subr.mxu0 0.0
        %1733 = vmatpush1.msra.mxu0 0.0
        %1734 = vmatprep.subr.mxu0 0.0
        %1735 = vmatpush1.msra.mxu0 0.0
        %1736 = vmatprep.subr.mxu0 0.0
        %1737 = vmatpush1.msra.mxu0 0.0
        %1738 = vmatprep.subr.mxu0 0.0
        %1739 = vmatpush1.msra.mxu0 0.0
        %1740 = vmatprep.subr.mxu0 0.0
        %1741 = vmatpush1.msra.mxu0 0.0
        %1742 = vmatprep.subr.mxu0 0.0
        %1743 = vmatpush1.msra.mxu0 0.0
        %1744 = vmatprep.subr.mxu0 0.0
        %1745 = vmatpush1.msra.mxu0 0.0
        %1746 = vmatprep.subr.mxu0 0.0
        %1747 = vmatpush1.msra.mxu0 0.0
        %1748 = vmatprep.subr.mxu0 0.0
        %1749 = vmatpush1.msra.mxu0 0.0
        %1750 = vmatprep.subr.mxu0 0.0
        %1751 = vmatpush1.msra.mxu0 0.0
        %1752 = vmatprep.subr.mxu0 0.0
        %1753 = vmatpush1.msra.mxu0 0.0
        %1754 = vmatprep.subr.mxu0 0.0
        %1755 = vmatpush1.msra.mxu0 0.0
        %1756 = vmatprep.subr.mxu0 0.0
        %1757 = vmatpush1.msra.mxu0 0.0
        %1758 = vmatprep.subr.mxu0 0.0
        %1759 = vmatpush1.msra.mxu0 0.0
        %1760 = vmatprep.mubr.f32.mxu0 0.0
        %v1761 = vand.u32 %v1188, 4294901760
        %1762 = vmatmul.mubr.f32.gmra.mrb[0].mxu0 %v1761
        %v1763 = vpop.f32.mrb[0].mxu0
        %v1764 = vadd.f32 %v1679, %v1763
        %v1765 = vpop.f32.mrb[0].mxu0
        %1766 = vmatprep.mubr.f32.mxu0 0.0
        %v1767 = vand.u32 %v1191, 4294901760
        %1768 = vmatmul.mubr.f32.gmra.mrb[0].mxu0 %v1767
        %v1769 = vpop.f32.mrb[0].mxu0
        %v1770 = vadd.f32 %v1685, %v1769
        %v1771 = vpop.f32.mrb[0].mxu0
        %1772 = vdwg.mxu0
        %vm1773 = vcmask 7168
        %v1774 = vsel %vm1773, %v1764, 0.0
        %v1775 = vsel %vm1773, %v1770, 0.0
        %v1776 = vadd.f32 %v1774, %v1775
        %v1777 = vrot.slane %v1776, 4
        %v1778 = vadd.f32 %v1776, %v1777
        %v1779 = vrot.slane %v1778, 2
        %v1780 = vadd.f32 %v1778, %v1779
        %v1781 = vrot.slane %v1780, 1
        %v1782 = vadd.f32 %v1780, %v1781
        %v1783 = vrcp.pop 16.0
        %v1784 = vmul.f32 %v1782, %v1783
        %v1785 = vsub.f32 %v1764, %v1784
        %v1786 = vsub.f32 %v1770, %v1784
        %v1787 = vmul.f32 %v1785, %v1785
        %v1788 = vmul.f32 %v1786, %v1786
        %v1789 = vsel %vm1773, %v1787, 0.0
        %v1790 = vsel %vm1773, %v1788, 0.0
        %v1791 = vadd.f32 %v1789, %v1790
        %v1792 = vrot.slane %v1791, 4
        %v1793 = vadd.f32 %v1791, %v1792
        %v1794 = vrot.slane %v1793, 2
        %v1795 = vadd.f32 %v1793, %v1794
        %v1796 = vrot.slane %v1795, 1
        %v1797 = vadd.f32 %v1795, %v1796
        %v1798 = vmul.f32 %v1797, %v1783
        %v1799 = vadd.f32 %v1798, 1e-05
        %v1800 = vrsqrt.pop %v1799
        %v1801 = vmul.f32 %v1785, %v1800
        %v1802 = vmul.f32 %v1786, %v1800
        %v1803 = vmul.f32 %v1801, %v1166
        %v1804 = vmul.f32 %v1802, %v1167
        %v1805 = vadd.f32 %v1803, %v1168
        %v1806 = vadd.f32 %v1804, %v1169
        %v1807 = vmax.f32 %v1805, 0.0
        %v1808 = vmax.f32 %v1806, 0.0
        %vm1809 = vcmask 130048
        %v1811 = vsel %vm1809, %v1170, 0
        %v1814 = vsel %vm1809, %v1171, 0
        %v1817 = vsel %vm1809, %v1172, 0
        %v1820 = vsel %vm1809, %v1173, 0
        %v1823 = vsel %vm1809, %v1174, 0
        %v1826 = vsel %vm1809, %v1175, 0
        %v1829 = vsel %vm1809, %v1176, 0
        %v1832 = vsel %vm1809, %v1177, 0
        %1834 = vmatprep.subr.mxu0 0.0
        %v1835 = vand.u32 %v1807, 4294901760
        %1836 = vmatpush1.msra.mxu0 %v1835
        %1837 = vmatprep.subr.mxu0 0.0
        %v1838 = vand.u32 %v1808, 4294901760
        %1839 = vmatpush1.msra.mxu0 %v1838
        %1840 = vmatprep.subr.mxu0 0.0
        %1841 = vmatpush1.msra.mxu0 0.0
        %1842 = vmatprep.subr.mxu0 0.0
        %1843 = vmatpush1.msra.mxu0 0.0
        %1844 = vmatprep.subr.mxu0 0.0
        %1845 = vmatpush1.msra.mxu0 0.0
        %1846 = vmatprep.subr.mxu0 0.0
        %1847 = vmatpush1.msra.mxu0 0.0
        %1848 = vmatprep.subr.mxu0 0.0
        %1849 = vmatpush1.msra.mxu0 0.0
        %1850 = vmatprep.subr.mxu0 0.0
        %1851 = vmatpush1.msra.mxu0 0.0
        %1852 = vmatprep.subr.mxu0 0.0
        %1853 = vmatpush1.msra.mxu0 0.0
        %1854 = vmatprep.subr.mxu0 0.0
        %1855 = vmatpush1.msra.mxu0 0.0
        %1856 = vmatprep.subr.mxu0 0.0
        %1857 = vmatpush1.msra.mxu0 0.0
        %1858 = vmatprep.subr.mxu0 0.0
        %1859 = vmatpush1.msra.mxu0 0.0
        %1860 = vmatprep.subr.mxu0 0.0
        %1861 = vmatpush1.msra.mxu0 0.0
        %1862 = vmatprep.subr.mxu0 0.0
        %1863 = vmatpush1.msra.mxu0 0.0
        %1864 = vmatprep.subr.mxu0 0.0
        %1865 = vmatpush1.msra.mxu0 0.0
        %1866 = vmatprep.subr.mxu0 0.0
        %1867 = vmatpush1.msra.mxu0 0.0
        %1868 = vmatprep.subr.mxu0 0.0
        %1869 = vmatpush1.msra.mxu0 0.0
        %1870 = vmatprep.subr.mxu0 0.0
        %1871 = vmatpush1.msra.mxu0 0.0
        %1872 = vmatprep.subr.mxu0 0.0
        %1873 = vmatpush1.msra.mxu0 0.0
        %1874 = vmatprep.subr.mxu0 0.0
        %1875 = vmatpush1.msra.mxu0 0.0
        %1876 = vmatprep.subr.mxu0 0.0
        %1877 = vmatpush1.msra.mxu0 0.0
        %1878 = vmatprep.subr.mxu0 0.0
        %1879 = vmatpush1.msra.mxu0 0.0
        %1880 = vmatprep.subr.mxu0 0.0
        %1881 = vmatpush1.msra.mxu0 0.0
        %1882 = vmatprep.subr.mxu0 0.0
        %1883 = vmatpush1.msra.mxu0 0.0
        %1884 = vmatprep.subr.mxu0 0.0
        %1885 = vmatpush1.msra.mxu0 0.0
        %1886 = vmatprep.subr.mxu0 0.0
        %1887 = vmatpush1.msra.mxu0 0.0
        %1888 = vmatprep.subr.mxu0 0.0
        %1889 = vmatpush1.msra.mxu0 0.0
        %1890 = vmatprep.subr.mxu0 0.0
        %1891 = vmatpush1.msra.mxu0 0.0
        %1892 = vmatprep.subr.mxu0 0.0
        %1893 = vmatpush1.msra.mxu0 0.0
        %1894 = vmatprep.subr.mxu0 0.0
        %1895 = vmatpush1.msra.mxu0 0.0
        %1896 = vmatprep.subr.mxu0 0.0
        %1897 = vmatpush1.msra.mxu0 0.0
        %1898 = vmatprep.subr.mxu0 0.0
        %1899 = vmatpush1.msra.mxu0 0.0
        %1900 = vmatprep.mubr.f32.mxu0 0.0
        %v1901 = vand.u32 %v1811, 4294901760
        %v1902 = vsub.f32 %v1811, %v1901
        %v1903 = vand.u32 %v1902, 4294901760
        %v1904 = vsub.f32 %v1902, %v1903
        %v1905 = vand.u32 %v1904, 4294901760
        %1906 = vmatmul.mubr.f32.gmra.mrb[0].mxu0 %v1905
        %v1907 = vpop.f32.mrb[0].mxu0
        %v1908 = vadd.f32 %v1178, %v1907
        %v1909 = vpop.f32.mrb[0].mxu0
        %1910 = vmatprep.mubr.f32.mxu0 0.0
        %v1911 = vand.u32 %v1814, 4294901760
        %v1912 = vsub.f32 %v1814, %v1911
        %v1913 = vand.u32 %v1912, 4294901760
        %v1914 = vsub.f32 %v1912, %v1913
        %v1915 = vand.u32 %v1914, 4294901760
        %1916 = vmatmul.mubr.f32.gmra.mrb[0].mxu0 %v1915
        %v1917 = vpop.f32.mrb[0].mxu0
        %v1918 = vadd.f32 %v1179, %v1917
        %v1919 = vpop.f32.mrb[0].mxu0
        %1920 = vmatprep.mubr.f32.mxu0 0.0
        %v1921 = vand.u32 %v1817, 4294901760
        %v1922 = vsub.f32 %v1817, %v1921
        %v1923 = vand.u32 %v1922, 4294901760
        %v1924 = vsub.f32 %v1922, %v1923
        %v1925 = vand.u32 %v1924, 4294901760
        %1926 = vmatmul.mubr.f32.gmra.mrb[0].mxu0 %v1925
        %v1927 = vpop.f32.mrb[0].mxu0
        %v1928 = vadd.f32 %v1180, %v1927
        %v1929 = vpop.f32.mrb[0].mxu0
        %1930 = vmatprep.mubr.f32.mxu0 0.0
        %v1931 = vand.u32 %v1820, 4294901760
        %v1932 = vsub.f32 %v1820, %v1931
        %v1933 = vand.u32 %v1932, 4294901760
        %v1934 = vsub.f32 %v1932, %v1933
        %v1935 = vand.u32 %v1934, 4294901760
        %1936 = vmatmul.mubr.f32.gmra.mrb[0].mxu0 %v1935
        %v1937 = vpop.f32.mrb[0].mxu0
        %v1938 = vadd.f32 %v1181, %v1937
        %v1939 = vpop.f32.mrb[0].mxu0
        %1940 = vmatprep.mubr.f32.mxu0 0.0
        %v1941 = vand.u32 %v1823, 4294901760
        %v1942 = vsub.f32 %v1823, %v1941
        %v1943 = vand.u32 %v1942, 4294901760
        %v1944 = vsub.f32 %v1942, %v1943
        %v1945 = vand.u32 %v1944, 4294901760
        %1946 = vmatmul.mubr.f32.gmra.mrb[0].mxu0 %v1945
        %v1947 = vpop.f32.mrb[0].mxu0
        %v1948 = vadd.f32 %v1182, %v1947
        %v1949 = vpop.f32.mrb[0].mxu0
        %1950 = vmatprep.mubr.f32.mxu0 0.0
        %v1951 = vand.u32 %v1826, 4294901760
        %v1952 = vsub.f32 %v1826, %v1951
        %v1953 = vand.u32 %v1952, 4294901760
        %v1954 = vsub.f32 %v1952, %v1953
        %v1955 = vand.u32 %v1954, 4294901760
        %1956 = vmatmul.mubr.f32.gmra.mrb[0].mxu0 %v1955
        %v1957 = vpop.f32.mrb[0].mxu0
        %v1958 = vadd.f32 %v1183, %v1957
        %v1959 = vpop.f32.mrb[0].mxu0
        %1960 = vmatprep.mubr.f32.mxu0 0.0
        %v1961 = vand.u32 %v1829, 4294901760
        %v1962 = vsub.f32 %v1829, %v1961
        %v1963 = vand.u32 %v1962, 4294901760
        %v1964 = vsub.f32 %v1962, %v1963
        %v1965 = vand.u32 %v1964, 4294901760
        %1966 = vmatmul.mubr.f32.gmra.mrb[0].mxu0 %v1965
        %v1967 = vpop.f32.mrb[0].mxu0
        %v1968 = vadd.f32 %v1184, %v1967
        %v1969 = vpop.f32.mrb[0].mxu0
        %1970 = vmatprep.mubr.f32.mxu0 0.0
        %v1971 = vand.u32 %v1832, 4294901760
        %v1972 = vsub.f32 %v1832, %v1971
        %v1973 = vand.u32 %v1972, 4294901760
        %v1974 = vsub.f32 %v1972, %v1973
        %v1975 = vand.u32 %v1974, 4294901760
        %1976 = vmatmul.mubr.f32.gmra.mrb[0].mxu0 %v1975
        %v1977 = vpop.f32.mrb[0].mxu0
        %v1978 = vadd.f32 %v1185, %v1977
        %v1979 = vpop.f32.mrb[0].mxu0
        %1980 = vdwg.mxu0
        %1981 = vmatprep.subr.mxu0 0.0
        %v1982 = vand.u32 %v1807, 4294901760
        %v1983 = vsub.f32 %v1807, %v1982
        %v1984 = vand.u32 %v1983, 4294901760
        %v1985 = vsub.f32 %v1983, %v1984
        %v1986 = vand.u32 %v1985, 4294901760
        %1987 = vmatpush1.msra.mxu0 %v1986
        %1988 = vmatprep.subr.mxu0 0.0
        %v1989 = vand.u32 %v1808, 4294901760
        %v1990 = vsub.f32 %v1808, %v1989
        %v1991 = vand.u32 %v1990, 4294901760
        %v1992 = vsub.f32 %v1990, %v1991
        %v1993 = vand.u32 %v1992, 4294901760
        %1994 = vmatpush1.msra.mxu0 %v1993
        %1995 = vmatprep.subr.mxu0 0.0
        %1996 = vmatpush1.msra.mxu0 0.0
        %1997 = vmatprep.subr.mxu0 0.0
        %1998 = vmatpush1.msra.mxu0 0.0
        %1999 = vmatprep.subr.mxu0 0.0
        %2000 = vmatpush1.msra.mxu0 0.0
        %2001 = vmatprep.subr.mxu0 0.0
        %2002 = vmatpush1.msra.mxu0 0.0
        %2003 = vmatprep.subr.mxu0 0.0
        %2004 = vmatpush1.msra.mxu0 0.0
        %2005 = vmatprep.subr.mxu0 0.0
        %2006 = vmatpush1.msra.mxu0 0.0
        %2007 = vmatprep.subr.mxu0 0.0
        %2008 = vmatpush1.msra.mxu0 0.0
        %2009 = vmatprep.subr.mxu0 0.0
        %2010 = vmatpush1.msra.mxu0 0.0
        %2011 = vmatprep.subr.mxu0 0.0
        %2012 = vmatpush1.msra.mxu0 0.0
        %2013 = vmatprep.subr.mxu0 0.0
        %2014 = vmatpush1.msra.mxu0 0.0
        %2015 = vmatprep.subr.mxu0 0.0
        %2016 = vmatpush1.msra.mxu0 0.0
        %2017 = vmatprep.subr.mxu0 0.0
        %2018 = vmatpush1.msra.mxu0 0.0
        %2019 = vmatprep.subr.mxu0 0.0
        %2020 = vmatpush1.msra.mxu0 0.0
        %2021 = vmatprep.subr.mxu0 0.0
        %2022 = vmatpush1.msra.mxu0 0.0
        %2023 = vmatprep.subr.mxu0 0.0
        %2024 = vmatpush1.msra.mxu0 0.0
        %2025 = vmatprep.subr.mxu0 0.0
        %2026 = vmatpush1.msra.mxu0 0.0
        %2027 = vmatprep.subr.mxu0 0.0
        %2028 = vmatpush1.msra.mxu0 0.0
        %2029 = vmatprep.subr.mxu0 0.0
        %2030 = vmatpush1.msra.mxu0 0.0
        %2031 = vmatprep.subr.mxu0 0.0
        %2032 = vmatpush1.msra.mxu0 0.0
        %2033 = vmatprep.subr.mxu0 0.0
        %2034 = vmatpush1.msra.mxu0 0.0
        %2035 = vmatprep.subr.mxu0 0.0
        %2036 = vmatpush1.msra.mxu0 0.0
        %2037 = vmatprep.subr.mxu0 0.0
        %2038 = vmatpush1.msra.mxu0 0.0
        %2039 = vmatprep.subr.mxu0 0.0
        %2040 = vmatpush1.msra.mxu0 0.0
        %2041 = vmatprep.subr.mxu0 0.0
        %2042 = vmatpush1.msra.mxu0 0.0
        %2043 = vmatprep.subr.mxu0 0.0
        %2044 = vmatpush1.msra.mxu0 0.0
        %2045 = vmatprep.subr.mxu0 0.0
        %2046 = vmatpush1.msra.mxu0 0.0
        %2047 = vmatprep.subr.mxu0 0.0
        %2048 = vmatpush1.msra.mxu0 0.0
        %2049 = vmatprep.subr.mxu0 0.0
        %2050 = vmatpush1.msra.mxu0 0.0
        %2051 = vmatprep.subr.mxu0 0.0
        %2052 = vmatpush1.msra.mxu0 0.0
        %2053 = vmatprep.subr.mxu0 0.0
        %2054 = vmatpush1.msra.mxu0 0.0
        %2055 = vmatprep.mubr.f32.mxu0 0.0
        %v2056 = vand.u32 %v1811, 4294901760
        %2057 = vmatmul.mubr.f32.gmra.mrb[0].mxu0 %v2056
        %v2058 = vpop.f32.mrb[0].mxu0
        %v2059 = vadd.f32 %v1908, %v2058
        %v2060 = vpop.f32.mrb[0].mxu0
        %2061 = vmatprep.mubr.f32.mxu0 0.0
        %v2062 = vand.u32 %v1814, 4294901760
        %2063 = vmatmul.mubr.f32.gmra.mrb[0].mxu0 %v2062
        %v2064 = vpop.f32.mrb[0].mxu0
        %v2065 = vadd.f32 %v1918, %v2064
        %v2066 = vpop.f32.mrb[0].mxu0
        %2067 = vmatprep.mubr.f32.mxu0 0.0
        %v2068 = vand.u32 %v1817, 4294901760
        %2069 = vmatmul.mubr.f32.gmra.mrb[0].mxu0 %v2068
        %v2070 = vpop.f32.mrb[0].mxu0
        %v2071 = vadd.f32 %v1928, %v2070
        %v2072 = vpop.f32.mrb[0].mxu0
        %2073 = vmatprep.mubr.f32.mxu0 0.0
        %v2074 = vand.u32 %v1820, 4294901760
        %2075 = vmatmul.mubr.f32.gmra.mrb[0].mxu0 %v2074
        %v2076 = vpop.f32.mrb[0].mxu0
        %v2077 = vadd.f32 %v1938, %v2076
        %v2078 = vpop.f32.mrb[0].mxu0
        %2079 = vmatprep.mubr.f32.mxu0 0.0
        %v2080 = vand.u32 %v1823, 4294901760
        %2081 = vmatmul.mubr.f32.gmra.mrb[0].mxu0 %v2080
        %v2082 = vpop.f32.mrb[0].mxu0
        %v2083 = vadd.f32 %v1948, %v2082
        %v2084 = vpop.f32.mrb[0].mxu0
        %2085 = vmatprep.mubr.f32.mxu0 0.0
        %v2086 = vand.u32 %v1826, 4294901760
        %2087 = vmatmul.mubr.f32.gmra.mrb[0].mxu0 %v2086
        %v2088 = vpop.f32.mrb[0].mxu0
        %v2089 = vadd.f32 %v1958, %v2088
        %v2090 = vpop.f32.mrb[0].mxu0
        %2091 = vmatprep.mubr.f32.mxu0 0.0
        %v2092 = vand.u32 %v1829, 4294901760
        %2093 = vmatmul.mubr.f32.gmra.mrb[0].mxu0 %v2092
        %v2094 = vpop.f32.mrb[0].mxu0
        %v2095 = vadd.f32 %v1968, %v2094
        %v2096 = vpop.f32.mrb[0].mxu0
        %2097 = vmatprep.mubr.f32.mxu0 0.0
        %v2098 = vand.u32 %v1832, 4294901760
        %2099 = vmatmul.mubr.f32.gmra.mrb[0].mxu0 %v2098
        %v2100 = vpop.f32.mrb[0].mxu0
        %v2101 = vadd.f32 %v1978, %v2100
        %v2102 = vpop.f32.mrb[0].mxu0
        %2103 = vdwg.mxu0
        %2104 = vmatprep.subr.mxu0 0.0
        %v2105 = vand.u32 %v1807, 4294901760
        %v2106 = vsub.f32 %v1807, %v2105
        %2107 = vmatpush1.msra.mxu0 %v2106
        %2108 = vmatprep.subr.mxu0 0.0
        %v2109 = vand.u32 %v1808, 4294901760
        %v2110 = vsub.f32 %v1808, %v2109
        %2111 = vmatpush1.msra.mxu0 %v2110
        %2112 = vmatprep.subr.mxu0 0.0
        %2113 = vmatpush1.msra.mxu0 0.0
        %2114 = vmatprep.subr.mxu0 0.0
        %2115 = vmatpush1.msra.mxu0 0.0
        %2116 = vmatprep.subr.mxu0 0.0
        %2117 = vmatpush1.msra.mxu0 0.0
        %2118 = vmatprep.subr.mxu0 0.0
        %2119 = vmatpush1.msra.mxu0 0.0
        %2120 = vmatprep.subr.mxu0 0.0
        %2121 = vmatpush1.msra.mxu0 0.0
        %2122 = vmatprep.subr.mxu0 0.0
        %2123 = vmatpush1.msra.mxu0 0.0
        %2124 = vmatprep.subr.mxu0 0.0
        %2125 = vmatpush1.msra.mxu0 0.0
        %2126 = vmatprep.subr.mxu0 0.0
        %2127 = vmatpush1.msra.mxu0 0.0
        %2128 = vmatprep.subr.mxu0 0.0
        %2129 = vmatpush1.msra.mxu0 0.0
        %2130 = vmatprep.subr.mxu0 0.0
        %2131 = vmatpush1.msra.mxu0 0.0
        %2132 = vmatprep.subr.mxu0 0.0
        %2133 = vmatpush1.msra.mxu0 0.0
        %2134 = vmatprep.subr.mxu0 0.0
        %2135 = vmatpush1.msra.mxu0 0.0
        %2136 = vmatprep.subr.mxu0 0.0
        %2137 = vmatpush1.msra.mxu0 0.0
        %2138 = vmatprep.subr.mxu0 0.0
        %2139 = vmatpush1.msra.mxu0 0.0
        %2140 = vmatprep.subr.mxu0 0.0
        %2141 = vmatpush1.msra.mxu0 0.0
        %2142 = vmatprep.subr.mxu0 0.0
        %2143 = vmatpush1.msra.mxu0 0.0
        %2144 = vmatprep.subr.mxu0 0.0
        %2145 = vmatpush1.msra.mxu0 0.0
        %2146 = vmatprep.subr.mxu0 0.0
        %2147 = vmatpush1.msra.mxu0 0.0
        %2148 = vmatprep.subr.mxu0 0.0
        %2149 = vmatpush1.msra.mxu0 0.0
        %2150 = vmatprep.subr.mxu0 0.0
        %2151 = vmatpush1.msra.mxu0 0.0
        %2152 = vmatprep.subr.mxu0 0.0
        %2153 = vmatpush1.msra.mxu0 0.0
        %2154 = vmatprep.subr.mxu0 0.0
        %2155 = vmatpush1.msra.mxu0 0.0
        %2156 = vmatprep.subr.mxu0 0.0
        %2157 = vmatpush1.msra.mxu0 0.0
        %2158 = vmatprep.subr.mxu0 0.0
        %2159 = vmatpush1.msra.mxu0 0.0
        %2160 = vmatprep.subr.mxu0 0.0
        %2161 = vmatpush1.msra.mxu0 0.0
        %2162 = vmatprep.subr.mxu0 0.0
        %2163 = vmatpush1.msra.mxu0 0.0
        %2164 = vmatprep.subr.mxu0 0.0
        %2165 = vmatpush1.msra.mxu0 0.0
        %2166 = vmatprep.subr.mxu0 0.0
        %2167 = vmatpush1.msra.mxu0 0.0
        %2168 = vmatprep.subr.mxu0 0.0
        %2169 = vmatpush1.msra.mxu0 0.0
        %2170 = vmatprep.subr.mxu0 0.0
        %2171 = vmatpush1.msra.mxu0 0.0
        %2172 = vmatprep.mubr.f32.mxu0 0.0
        %v2173 = vand.u32 %v1811, 4294901760
        %v2174 = vsub.f32 %v1811, %v2173
        %2175 = vmatmul.mubr.f32.gmra.mrb[0].mxu0 %v2174
        %v2176 = vpop.f32.mrb[0].mxu0
        %v2177 = vadd.f32 %v2059, %v2176
        %v2178 = vpop.f32.mrb[0].mxu0
        %2179 = vmatprep.mubr.f32.mxu0 0.0
        %v2180 = vand.u32 %v1814, 4294901760
        %v2181 = vsub.f32 %v1814, %v2180
        %2182 = vmatmul.mubr.f32.gmra.mrb[0].mxu0 %v2181
        %v2183 = vpop.f32.mrb[0].mxu0
        %v2184 = vadd.f32 %v2065, %v2183
        %v2185 = vpop.f32.mrb[0].mxu0
        %2186 = vmatprep.mubr.f32.mxu0 0.0
        %v2187 = vand.u32 %v1817, 4294901760
        %v2188 = vsub.f32 %v1817, %v2187
        %2189 = vmatmul.mubr.f32.gmra.mrb[0].mxu0 %v2188
        %v2190 = vpop.f32.mrb[0].mxu0
        %v2191 = vadd.f32 %v2071, %v2190
        %v2192 = vpop.f32.mrb[0].mxu0
        %2193 = vmatprep.mubr.f32.mxu0 0.0
        %v2194 = vand.u32 %v1820, 4294901760
        %v2195 = vsub.f32 %v1820, %v2194
        %2196 = vmatmul.mubr.f32.gmra.mrb[0].mxu0 %v2195
        %v2197 = vpop.f32.mrb[0].mxu0
        %v2198 = vadd.f32 %v2077, %v2197
        %v2199 = vpop.f32.mrb[0].mxu0
        %2200 = vmatprep.mubr.f32.mxu0 0.0
        %v2201 = vand.u32 %v1823, 4294901760
        %v2202 = vsub.f32 %v1823, %v2201
        %2203 = vmatmul.mubr.f32.gmra.mrb[0].mxu0 %v2202
        %v2204 = vpop.f32.mrb[0].mxu0
        %v2205 = vadd.f32 %v2083, %v2204
        %v2206 = vpop.f32.mrb[0].mxu0
        %2207 = vmatprep.mubr.f32.mxu0 0.0
        %v2208 = vand.u32 %v1826, 4294901760
        %v2209 = vsub.f32 %v1826, %v2208
        %2210 = vmatmul.mubr.f32.gmra.mrb[0].mxu0 %v2209
        %v2211 = vpop.f32.mrb[0].mxu0
        %v2212 = vadd.f32 %v2089, %v2211
        %v2213 = vpop.f32.mrb[0].mxu0
        %2214 = vmatprep.mubr.f32.mxu0 0.0
        %v2215 = vand.u32 %v1829, 4294901760
        %v2216 = vsub.f32 %v1829, %v2215
        %2217 = vmatmul.mubr.f32.gmra.mrb[0].mxu0 %v2216
        %v2218 = vpop.f32.mrb[0].mxu0
        %v2219 = vadd.f32 %v2095, %v2218
        %v2220 = vpop.f32.mrb[0].mxu0
        %2221 = vmatprep.mubr.f32.mxu0 0.0
        %v2222 = vand.u32 %v1832, 4294901760
        %v2223 = vsub.f32 %v1832, %v2222
        %2224 = vmatmul.mubr.f32.gmra.mrb[0].mxu0 %v2223
        %v2225 = vpop.f32.mrb[0].mxu0
        %v2226 = vadd.f32 %v2101, %v2225
        %v2227 = vpop.f32.mrb[0].mxu0
        %2228 = vdwg.mxu0
        %2229 = vmatprep.subr.mxu0 0.0
        %v2230 = vand.u32 %v1807, 4294901760
        %2231 = vmatpush1.msra.mxu0 %v2230
        %2232 = vmatprep.subr.mxu0 0.0
        %v2233 = vand.u32 %v1808, 4294901760
        %2234 = vmatpush1.msra.mxu0 %v2233
        %2235 = vmatprep.subr.mxu0 0.0
        %2236 = vmatpush1.msra.mxu0 0.0
        %2237 = vmatprep.subr.mxu0 0.0
        %2238 = vmatpush1.msra.mxu0 0.0
        %2239 = vmatprep.subr.mxu0 0.0
        %2240 = vmatpush1.msra.mxu0 0.0
        %2241 = vmatprep.subr.mxu0 0.0
        %2242 = vmatpush1.msra.mxu0 0.0
        %2243 = vmatprep.subr.mxu0 0.0
        %2244 = vmatpush1.msra.mxu0 0.0
        %2245 = vmatprep.subr.mxu0 0.0
        %2246 = vmatpush1.msra.mxu0 0.0
        %2247 = vmatprep.subr.mxu0 0.0
        %2248 = vmatpush1.msra.mxu0 0.0
        %2249 = vmatprep.subr.mxu0 0.0
        %2250 = vmatpush1.msra.mxu0 0.0
        %2251 = vmatprep.subr.mxu0 0.0
        %2252 = vmatpush1.msra.mxu0 0.0
        %2253 = vmatprep.subr.mxu0 0.0
        %2254 = vmatpush1.msra.mxu0 0.0
        %2255 = vmatprep.subr.mxu0 0.0
        %2256 = vmatpush1.msra.mxu0 0.0
        %2257 = vmatprep.subr.mxu0 0.0
        %2258 = vmatpush1.msra.mxu0 0.0
        %2259 = vmatprep.subr.mxu0 0.0
        %2260 = vmatpush1.msra.mxu0 0.0
        %2261 = vmatprep.subr.mxu0 0.0
        %2262 = vmatpush1.msra.mxu0 0.0
        %2263 = vmatprep.subr.mxu0 0.0
        %2264 = vmatpush1.msra.mxu0 0.0
        %2265 = vmatprep.subr.mxu0 0.0
        %2266 = vmatpush1.msra.mxu0 0.0
        %2267 = vmatprep.subr.mxu0 0.0
        %2268 = vmatpush1.msra.mxu0 0.0
        %2269 = vmatprep.subr.mxu0 0.0
        %2270 = vmatpush1.msra.mxu0 0.0
        %2271 = vmatprep.subr.mxu0 0.0
        %2272 = vmatpush1.msra.mxu0 0.0
        %2273 = vmatprep.subr.mxu0 0.0
        %2274 = vmatpush1.msra.mxu0 0.0
        %2275 = vmatprep.subr.mxu0 0.0
        %2276 = vmatpush1.msra.mxu0 0.0
        %2277 = vmatprep.subr.mxu0 0.0
        %2278 = vmatpush1.msra.mxu0 0.0
        %2279 = vmatprep.subr.mxu0 0.0
        %2280 = vmatpush1.msra.mxu0 0.0
        %2281 = vmatprep.subr.mxu0 0.0
        %2282 = vmatpush1.msra.mxu0 0.0
        %2283 = vmatprep.subr.mxu0 0.0
        %2284 = vmatpush1.msra.mxu0 0.0
        %2285 = vmatprep.subr.mxu0 0.0
        %2286 = vmatpush1.msra.mxu0 0.0
        %2287 = vmatprep.subr.mxu0 0.0
        %2288 = vmatpush1.msra.mxu0 0.0
        %2289 = vmatprep.subr.mxu0 0.0
        %2290 = vmatpush1.msra.mxu0 0.0
        %2291 = vmatprep.subr.mxu0 0.0
        %2292 = vmatpush1.msra.mxu0 0.0
        %2293 = vmatprep.subr.mxu0 0.0
        %2294 = vmatpush1.msra.mxu0 0.0
        %2295 = vmatprep.mubr.f32.mxu0 0.0
        %v2296 = vand.u32 %v1811, 4294901760
        %v2297 = vsub.f32 %v1811, %v2296
        %v2298 = vand.u32 %v2297, 4294901760
        %2299 = vmatmul.mubr.f32.gmra.mrb[0].mxu0 %v2298
        %v2300 = vpop.f32.mrb[0].mxu0
        %v2301 = vadd.f32 %v2177, %v2300
        %v2302 = vpop.f32.mrb[0].mxu0
        %2303 = vmatprep.mubr.f32.mxu0 0.0
        %v2304 = vand.u32 %v1814, 4294901760
        %v2305 = vsub.f32 %v1814, %v2304
        %v2306 = vand.u32 %v2305, 4294901760
        %2307 = vmatmul.mubr.f32.gmra.mrb[0].mxu0 %v2306
        %v2308 = vpop.f32.mrb[0].mxu0
        %v2309 = vadd.f32 %v2184, %v2308
        %v2310 = vpop.f32.mrb[0].mxu0
        %2311 = vmatprep.mubr.f32.mxu0 0.0
        %v2312 = vand.u32 %v1817, 4294901760
        %v2313 = vsub.f32 %v1817, %v2312
        %v2314 = vand.u32 %v2313, 4294901760
        %2315 = vmatmul.mubr.f32.gmra.mrb[0].mxu0 %v2314
        %v2316 = vpop.f32.mrb[0].mxu0
        %v2317 = vadd.f32 %v2191, %v2316
        %v2318 = vpop.f32.mrb[0].mxu0
        %2319 = vmatprep.mubr.f32.mxu0 0.0
        %v2320 = vand.u32 %v1820, 4294901760
        %v2321 = vsub.f32 %v1820, %v2320
        %v2322 = vand.u32 %v2321, 4294901760
        %2323 = vmatmul.mubr.f32.gmra.mrb[0].mxu0 %v2322
        %v2324 = vpop.f32.mrb[0].mxu0
        %v2325 = vadd.f32 %v2198, %v2324
        %v2326 = vpop.f32.mrb[0].mxu0
        %2327 = vmatprep.mubr.f32.mxu0 0.0
        %v2328 = vand.u32 %v1823, 4294901760
        %v2329 = vsub.f32 %v1823, %v2328
        %v2330 = vand.u32 %v2329, 4294901760
        %2331 = vmatmul.mubr.f32.gmra.mrb[0].mxu0 %v2330
        %v2332 = vpop.f32.mrb[0].mxu0
        %v2333 = vadd.f32 %v2205, %v2332
        %v2334 = vpop.f32.mrb[0].mxu0
        %2335 = vmatprep.mubr.f32.mxu0 0.0
        %v2336 = vand.u32 %v1826, 4294901760
        %v2337 = vsub.f32 %v1826, %v2336
        %v2338 = vand.u32 %v2337, 4294901760
        %2339 = vmatmul.mubr.f32.gmra.mrb[0].mxu0 %v2338
        %v2340 = vpop.f32.mrb[0].mxu0
        %v2341 = vadd.f32 %v2212, %v2340
        %v2342 = vpop.f32.mrb[0].mxu0
        %2343 = vmatprep.mubr.f32.mxu0 0.0
        %v2344 = vand.u32 %v1829, 4294901760
        %v2345 = vsub.f32 %v1829, %v2344
        %v2346 = vand.u32 %v2345, 4294901760
        %2347 = vmatmul.mubr.f32.gmra.mrb[0].mxu0 %v2346
        %v2348 = vpop.f32.mrb[0].mxu0
        %v2349 = vadd.f32 %v2219, %v2348
        %v2350 = vpop.f32.mrb[0].mxu0
        %2351 = vmatprep.mubr.f32.mxu0 0.0
        %v2352 = vand.u32 %v1832, 4294901760
        %v2353 = vsub.f32 %v1832, %v2352
        %v2354 = vand.u32 %v2353, 4294901760
        %2355 = vmatmul.mubr.f32.gmra.mrb[0].mxu0 %v2354
        %v2356 = vpop.f32.mrb[0].mxu0
        %v2357 = vadd.f32 %v2226, %v2356
        %v2358 = vpop.f32.mrb[0].mxu0
        %2359 = vdwg.mxu0
        %2360 = vmatprep.subr.mxu0 0.0
        %v2361 = vand.u32 %v1807, 4294901760
        %v2362 = vsub.f32 %v1807, %v2361
        %v2363 = vand.u32 %v2362, 4294901760
        %2364 = vmatpush1.msra.mxu0 %v2363
        %2365 = vmatprep.subr.mxu0 0.0
        %v2366 = vand.u32 %v1808, 4294901760
        %v2367 = vsub.f32 %v1808, %v2366
        %v2368 = vand.u32 %v2367, 4294901760
        %2369 = vmatpush1.msra.mxu0 %v2368
        %2370 = vmatprep.subr.mxu0 0.0
        %2371 = vmatpush1.msra.mxu0 0.0
        %2372 = vmatprep.subr.mxu0 0.0
        %2373 = vmatpush1.msra.mxu0 0.0
        %2374 = vmatprep.subr.mxu0 0.0
        %2375 = vmatpush1.msra.mxu0 0.0
        %2376 = vmatprep.subr.mxu0 0.0
        %2377 = vmatpush1.msra.mxu0 0.0
        %2378 = vmatprep.subr.mxu0 0.0
        %2379 = vmatpush1.msra.mxu0 0.0
        %2380 = vmatprep.subr.mxu0 0.0
        %2381 = vmatpush1.msra.mxu0 0.0
        %2382 = vmatprep.subr.mxu0 0.0
        %2383 = vmatpush1.msra.mxu0 0.0
        %2384 = vmatprep.subr.mxu0 0.0
        %2385 = vmatpush1.msra.mxu0 0.0
        %2386 = vmatprep.subr.mxu0 0.0
        %2387 = vmatpush1.msra.mxu0 0.0
        %2388 = vmatprep.subr.mxu0 0.0
        %2389 = vmatpush1.msra.mxu0 0.0
        %2390 = vmatprep.subr.mxu0 0.0
        %2391 = vmatpush1.msra.mxu0 0.0
        %2392 = vmatprep.subr.mxu0 0.0
        %2393 = vmatpush1.msra.mxu0 0.0
        %2394 = vmatprep.subr.mxu0 0.0
        %2395 = vmatpush1.msra.mxu0 0.0
        %2396 = vmatprep.subr.mxu0 0.0
        %2397 = vmatpush1.msra.mxu0 0.0
        %2398 = vmatprep.subr.mxu0 0.0
        %2399 = vmatpush1.msra.mxu0 0.0
        %2400 = vmatprep.subr.mxu0 0.0
        %2401 = vmatpush1.msra.mxu0 0.0
        %2402 = vmatprep.subr.mxu0 0.0
        %2403 = vmatpush1.msra.mxu0 0.0
        %2404 = vmatprep.subr.mxu0 0.0
        %2405 = vmatpush1.msra.mxu0 0.0
        %2406 = vmatprep.subr.mxu0 0.0
        %2407 = vmatpush1.msra.mxu0 0.0
        %2408 = vmatprep.subr.mxu0 0.0
        %2409 = vmatpush1.msra.mxu0 0.0
        %2410 = vmatprep.subr.mxu0 0.0
        %2411 = vmatpush1.msra.mxu0 0.0
        %2412 = vmatprep.subr.mxu0 0.0
        %2413 = vmatpush1.msra.mxu0 0.0
        %2414 = vmatprep.subr.mxu0 0.0
        %2415 = vmatpush1.msra.mxu0 0.0
        %2416 = vmatprep.subr.mxu0 0.0
        %2417 = vmatpush1.msra.mxu0 0.0
        %2418 = vmatprep.subr.mxu0 0.0
        %2419 = vmatpush1.msra.mxu0 0.0
        %2420 = vmatprep.subr.mxu0 0.0
        %2421 = vmatpush1.msra.mxu0 0.0
        %2422 = vmatprep.subr.mxu0 0.0
        %2423 = vmatpush1.msra.mxu0 0.0
        %2424 = vmatprep.subr.mxu0 0.0
        %2425 = vmatpush1.msra.mxu0 0.0
        %2426 = vmatprep.subr.mxu0 0.0
        %2427 = vmatpush1.msra.mxu0 0.0
        %2428 = vmatprep.subr.mxu0 0.0
        %2429 = vmatpush1.msra.mxu0 0.0
        %2430 = vmatprep.mubr.f32.mxu0 0.0
        %v2431 = vand.u32 %v1811, 4294901760
        %2432 = vmatmul.mubr.f32.gmra.mrb[0].mxu0 %v2431
        %v2433 = vpop.f32.mrb[0].mxu0
        %v2434 = vadd.f32 %v2301, %v2433
        %v2435 = vpop.f32.mrb[0].mxu0
        %2436 = vmatprep.mubr.f32.mxu0 0.0
        %v2437 = vand.u32 %v1814, 4294901760
        %2438 = vmatmul.mubr.f32.gmra.mrb[0].mxu0 %v2437
        %v2439 = vpop.f32.mrb[0].mxu0
        %v2440 = vadd.f32 %v2309, %v2439
        %v2441 = vpop.f32.mrb[0].mxu0
        %2442 = vmatprep.mubr.f32.mxu0 0.0
        %v2443 = vand.u32 %v1817, 4294901760
        %2444 = vmatmul.mubr.f32.gmra.mrb[0].mxu0 %v2443
        %v2445 = vpop.f32.mrb[0].mxu0
        %v2446 = vadd.f32 %v2317, %v2445
        %v2447 = vpop.f32.mrb[0].mxu0
        %2448 = vmatprep.mubr.f32.mxu0 0.0
        %v2449 = vand.u32 %v1820, 4294901760
        %2450 = vmatmul.mubr.f32.gmra.mrb[0].mxu0 %v2449
        %v2451 = vpop.f32.mrb[0].mxu0
        %v2452 = vadd.f32 %v2325, %v2451
        %v2453 = vpop.f32.mrb[0].mxu0
        %2454 = vmatprep.mubr.f32.mxu0 0.0
        %v2455 = vand.u32 %v1823, 4294901760
        %2456 = vmatmul.mubr.f32.gmra.mrb[0].mxu0 %v2455
        %v2457 = vpop.f32.mrb[0].mxu0
        %v2458 = vadd.f32 %v2333, %v2457
        %v2459 = vpop.f32.mrb[0].mxu0
        %2460 = vmatprep.mubr.f32.mxu0 0.0
        %v2461 = vand.u32 %v1826, 4294901760
        %2462 = vmatmul.mubr.f32.gmra.mrb[0].mxu0 %v2461
        %v2463 = vpop.f32.mrb[0].mxu0
        %v2464 = vadd.f32 %v2341, %v2463
        %v2465 = vpop.f32.mrb[0].mxu0
        %2466 = vmatprep.mubr.f32.mxu0 0.0
        %v2467 = vand.u32 %v1829, 4294901760
        %2468 = vmatmul.mubr.f32.gmra.mrb[0].mxu0 %v2467
        %v2469 = vpop.f32.mrb[0].mxu0
        %v2470 = vadd.f32 %v2349, %v2469
        %v2471 = vpop.f32.mrb[0].mxu0
        %2472 = vmatprep.mubr.f32.mxu0 0.0
        %v2473 = vand.u32 %v1832, 4294901760
        %2474 = vmatmul.mubr.f32.gmra.mrb[0].mxu0 %v2473
        %v2475 = vpop.f32.mrb[0].mxu0
        %v2476 = vadd.f32 %v2357, %v2475
        %v2477 = vpop.f32.mrb[0].mxu0
        %2478 = vdwg.mxu0
        %2479 = vmatprep.subr.mxu0 0.0
        %v2480 = vand.u32 %v1807, 4294901760
        %2481 = vmatpush1.msra.mxu0 %v2480
        %2482 = vmatprep.subr.mxu0 0.0
        %v2483 = vand.u32 %v1808, 4294901760
        %2484 = vmatpush1.msra.mxu0 %v2483
        %2485 = vmatprep.subr.mxu0 0.0
        %2486 = vmatpush1.msra.mxu0 0.0
        %2487 = vmatprep.subr.mxu0 0.0
        %2488 = vmatpush1.msra.mxu0 0.0
        %2489 = vmatprep.subr.mxu0 0.0
        %2490 = vmatpush1.msra.mxu0 0.0
        %2491 = vmatprep.subr.mxu0 0.0
        %2492 = vmatpush1.msra.mxu0 0.0
        %2493 = vmatprep.subr.mxu0 0.0
        %2494 = vmatpush1.msra.mxu0 0.0
        %2495 = vmatprep.subr.mxu0 0.0
        %2496 = vmatpush1.msra.mxu0 0.0
        %2497 = vmatprep.subr.mxu0 0.0
        %2498 = vmatpush1.msra.mxu0 0.0
        %2499 = vmatprep.subr.mxu0 0.0
        %2500 = vmatpush1.msra.mxu0 0.0
        %2501 = vmatprep.subr.mxu0 0.0
        %2502 = vmatpush1.msra.mxu0 0.0
        %2503 = vmatprep.subr.mxu0 0.0
        %2504 = vmatpush1.msra.mxu0 0.0
        %2505 = vmatprep.subr.mxu0 0.0
        %2506 = vmatpush1.msra.mxu0 0.0
        %2507 = vmatprep.subr.mxu0 0.0
        %2508 = vmatpush1.msra.mxu0 0.0
        %2509 = vmatprep.subr.mxu0 0.0
        %2510 = vmatpush1.msra.mxu0 0.0
        %2511 = vmatprep.subr.mxu0 0.0
        %2512 = vmatpush1.msra.mxu0 0.0
        %2513 = vmatprep.subr.mxu0 0.0
        %2514 = vmatpush1.msra.mxu0 0.0
        %2515 = vmatprep.subr.mxu0 0.0
        %2516 = vmatpush1.msra.mxu0 0.0
        %2517 = vmatprep.subr.mxu0 0.0
        %2518 = vmatpush1.msra.mxu0 0.0
        %2519 = vmatprep.subr.mxu0 0.0
        %2520 = vmatpush1.msra.mxu0 0.0
        %2521 = vmatprep.subr.mxu0 0.0
        %2522 = vmatpush1.msra.mxu0 0.0
        %2523 = vmatprep.subr.mxu0 0.0
        %2524 = vmatpush1.msra.mxu0 0.0
        %2525 = vmatprep.subr.mxu0 0.0
        %2526 = vmatpush1.msra.mxu0 0.0
        %2527 = vmatprep.subr.mxu0 0.0
        %2528 = vmatpush1.msra.mxu0 0.0
        %2529 = vmatprep.subr.mxu0 0.0
        %2530 = vmatpush1.msra.mxu0 0.0
        %2531 = vmatprep.subr.mxu0 0.0
        %2532 = vmatpush1.msra.mxu0 0.0
        %2533 = vmatprep.subr.mxu0 0.0
        %2534 = vmatpush1.msra.mxu0 0.0
        %2535 = vmatprep.subr.mxu0 0.0
        %2536 = vmatpush1.msra.mxu0 0.0
        %2537 = vmatprep.subr.mxu0 0.0
        %2538 = vmatpush1.msra.mxu0 0.0
        %2539 = vmatprep.subr.mxu0 0.0
        %2540 = vmatpush1.msra.mxu0 0.0
        %2541 = vmatprep.subr.mxu0 0.0
        %2542 = vmatpush1.msra.mxu0 0.0
        %2543 = vmatprep.subr.mxu0 0.0
        %2544 = vmatpush1.msra.mxu0 0.0
        %2545 = vmatprep.mubr.f32.mxu0 0.0
        %v2546 = vand.u32 %v1811, 4294901760
        %2547 = vmatmul.mubr.f32.gmra.mrb[0].mxu0 %v2546
        %v2548 = vpop.f32.mrb[0].mxu0
        %v2549 = vadd.f32 %v2434, %v2548
        %v2550 = vpop.f32.mrb[0].mxu0
        %2551 = vmatprep.mubr.f32.mxu0 0.0
        %v2552 = vand.u32 %v1814, 4294901760
        %2553 = vmatmul.mubr.f32.gmra.mrb[0].mxu0 %v2552
        %v2554 = vpop.f32.mrb[0].mxu0
        %v2555 = vadd.f32 %v2440, %v2554
        %v2556 = vpop.f32.mrb[0].mxu0
        %2557 = vmatprep.mubr.f32.mxu0 0.0
        %v2558 = vand.u32 %v1817, 4294901760
        %2559 = vmatmul.mubr.f32.gmra.mrb[0].mxu0 %v2558
        %v2560 = vpop.f32.mrb[0].mxu0
        %v2561 = vadd.f32 %v2446, %v2560
        %v2562 = vpop.f32.mrb[0].mxu0
        %2563 = vmatprep.mubr.f32.mxu0 0.0
        %v2564 = vand.u32 %v1820, 4294901760
        %2565 = vmatmul.mubr.f32.gmra.mrb[0].mxu0 %v2564
        %v2566 = vpop.f32.mrb[0].mxu0
        %v2567 = vadd.f32 %v2452, %v2566
        %v2568 = vpop.f32.mrb[0].mxu0
        %2569 = vmatprep.mubr.f32.mxu0 0.0
        %v2570 = vand.u32 %v1823, 4294901760
        %2571 = vmatmul.mubr.f32.gmra.mrb[0].mxu0 %v2570
        %v2572 = vpop.f32.mrb[0].mxu0
        %v2573 = vadd.f32 %v2458, %v2572
        %v2574 = vpop.f32.mrb[0].mxu0
        %2575 = vmatprep.mubr.f32.mxu0 0.0
        %v2576 = vand.u32 %v1826, 4294901760
        %2577 = vmatmul.mubr.f32.gmra.mrb[0].mxu0 %v2576
        %v2578 = vpop.f32.mrb[0].mxu0
        %v2579 = vadd.f32 %v2464, %v2578
        %v2580 = vpop.f32.mrb[0].mxu0
        %2581 = vmatprep.mubr.f32.mxu0 0.0
        %v2582 = vand.u32 %v1829, 4294901760
        %2583 = vmatmul.mubr.f32.gmra.mrb[0].mxu0 %v2582
        %v2584 = vpop.f32.mrb[0].mxu0
        %v2585 = vadd.f32 %v2470, %v2584
        %v2586 = vpop.f32.mrb[0].mxu0
        %2587 = vmatprep.mubr.f32.mxu0 0.0
        %v2588 = vand.u32 %v1832, 4294901760
        %2589 = vmatmul.mubr.f32.gmra.mrb[0].mxu0 %v2588
        %v2590 = vpop.f32.mrb[0].mxu0
        %v2591 = vadd.f32 %v2476, %v2590
        %v2592 = vpop.f32.mrb[0].mxu0
        %2593 = vdwg.mxu0
        %v2594 = vstv %s1186
        %v2595 = vmul.f32 %v2594, %v2549
        %v2596 = vmul.f32 %v2594, %v2555
        %v2597 = vmul.f32 %v2594, %v2561
        %v2598 = vmul.f32 %v2594, %v2567
        %v2599 = vmul.f32 %v2594, %v2573
        %v2600 = vmul.f32 %v2594, %v2579
        %v2601 = vmul.f32 %v2594, %v2585
        %v2602 = vmul.f32 %v2594, %v2591
        %2604 = vset.pattern.permute.xlu0 0
        %2605 = vperm.xlu0 %2604, %v2595
        %v2606 = vpop.permute.xlu0 %2605
        %2609 = vset.pattern.permute.xlu0 0
        %2610 = vperm.xlu0 %2609, %v2596
        %v2611 = vpop.permute.xlu0 %2610
        %2614 = vset.pattern.permute.xlu0 0
        %2615 = vperm.xlu0 %2614, %v2597
        %v2616 = vpop.permute.xlu0 %2615
        %2619 = vset.pattern.permute.xlu0 0
        %2620 = vperm.xlu0 %2619, %v2598
        %v2621 = vpop.permute.xlu0 %2620
        %2624 = vset.pattern.permute.xlu0 0
        %2625 = vperm.xlu0 %2624, %v2599
        %v2626 = vpop.permute.xlu0 %2625
        %2629 = vset.pattern.permute.xlu0 0
        %2630 = vperm.xlu0 %2629, %v2600
        %v2631 = vpop.permute.xlu0 %2630
        %2634 = vset.pattern.permute.xlu0 0
        %2635 = vperm.xlu0 %2634, %v2601
        %v2636 = vpop.permute.xlu0 %2635
        %2639 = vset.pattern.permute.xlu0 0
        %2640 = vperm.xlu0 %2639, %v2602
        %v2641 = vpop.permute.xlu0 %2640
        %v2643 = vadd.f32 %v375, %v2606
        %v2644 = vadd.f32 %v376, %v2606
        %v2645 = vadd.f32 %v377, %v2611
        %v2646 = vadd.f32 %v378, %v2611
        %v2647 = vadd.f32 %v379, %v2616
        %v2648 = vadd.f32 %v380, %v2616
        %v2649 = vadd.f32 %v381, %v2621
        %v2650 = vadd.f32 %v382, %v2621
        %v2651 = vadd.f32 %v383, %v2626
        %v2652 = vadd.f32 %v384, %v2626
        %v2653 = vadd.f32 %v385, %v2631
        %v2654 = vadd.f32 %v386, %v2631
        %v2655 = vadd.f32 %v387, %v2636
        %v2656 = vadd.f32 %v388, %v2636
        %v2657 = vadd.f32 %v389, %v2641
        %v2658 = vadd.f32 %v390, %v2641
        %2659 = vst [vmem:[%s369] sm:$0xff] %v2643
        %2660 = vst [vmem:[%s369 + $0x8] sm:$0xff] %v2644
        %2661 = vst [vmem:[%s369 + $0x10] sm:$0xff] %v2645
        %2662 = vst [vmem:[%s369 + $0x18] sm:$0xff] %v2646
        %2663 = vst [vmem:[%s369 + $0x20] sm:$0xff] %v2647
        %2664 = vst [vmem:[%s369 + $0x28] sm:$0xff] %v2648
        %2665 = vst [vmem:[%s369 + $0x30] sm:$0xff] %v2649
        %2666 = vst [vmem:[%s369 + $0x38] sm:$0xff] %v2650
        %2667 = vst [vmem:[%s369 + $0x40] sm:$0xff] %v2651
        %2668 = vst [vmem:[%s369 + $0x48] sm:$0xff] %v2652
        %2669 = vst [vmem:[%s369 + $0x50] sm:$0xff] %v2653
        %2670 = vst [vmem:[%s369 + $0x58] sm:$0xff] %v2654
        %2671 = vst [vmem:[%s369 + $0x60] sm:$0xff] %v2655
        %2672 = vst [vmem:[%s369 + $0x68] sm:$0xff] %v2656
        %2673 = vst [vmem:[%s369 + $0x70] sm:$0xff] %v2657
        %2674 = vst [vmem:[%s369 + $0x78] sm:$0xff] %v2658
        %s2675 = sand.u32 %s250, 1
        %s2676 = scalar_lea.sflag [#allocation6], %s2675
        %s2677 = sand.u32 %s250, 1
        %s2678 = smul.addr %s2677, 128
        %s2679 = scalar_lea.vmem [#allocation7], %s2678
        // Predicated region
        $region65: #{tpu_custom_call.1} parent=59 // pred_check
          %p2680 = pneg %p260
        $region66: #{tpu_custom_call.1} parent=59 // pred_check_branch
          %2682 = sbr.rel (%p2680) target = $region68
        $region67: #{tpu_custom_call.1} parent=59 // pred_region
          %s2684 = ssub.s32 2048, 2048
          %2685 = vsyncadd %s2676, %s2684
          %s2686 = smul.addr %s27, 16
          %s2687 = smul.addr %s2686, 128
          %s2688 = scalar_lea.hbm %s10, %s2687
          %s2689 = sshll.u32 %s2679, 4
          %s2690 = int_to_ptr.vmem [resolvable:$true] %s2689
          %2695 = dma.vmem_to_hbm [thread:$0]  %s2690, 2048, %s2688, %s2676, 256, 256, 16
        $region68: #{tpu_custom_call.1} parent=59 // pred_fallthru
          _
      $region60: #{tpu_custom_call.1} parent=5 // pred_fallthru
        _
      %p2696 = scmp.le.s32.totalorder 2, %s22
      // Predicated region
      $region69: #{tpu_custom_call.1} parent=5 // pred_check
        %p2697 = pneg %p2696
      $region70: #{tpu_custom_call.1} parent=5 // pred_check_branch
        %2699 = sbr.rel (%p2697) target = $region72
      $region71: #{tpu_custom_call.1} parent=5 // pred_region
        %s2700 = ssub.s32 %s22, 2
        // Predicated region
        $region73: #{tpu_custom_call.1} parent=71 // pred_check
          %p2701 = pneg %p266
        $region74: #{tpu_custom_call.1} parent=71 // pred_check_branch
          %2703 = sbr.rel (%p2701) target = $region76
        $region75: #{tpu_custom_call.1} parent=71 // pred_region
          %s2704 = sand.u32 %s251, 1
          %s2705 = scalar_lea.sflag [#allocation6], %s2704
          %s2706 = sand.u32 %s251, 1
          %s2707 = smul.addr %s2706, 128
          %s2708 = scalar_lea.vmem [#allocation7], %s2707
          %2709 = dma.done %s2705, 2048
        $region76: #{tpu_custom_call.1} parent=71 // pred_fallthru
          _
      $region72: #{tpu_custom_call.1} parent=5 // pred_fallthru
        _
    $region6: #{tpu_custom_call.1} parent=1 // loop_footer
      %s26 = sadd.s32 1, %s22
    $region7: #{tpu_custom_call.1} parent=1 // loop_footer_branch
      %21 = sbr.rel target = $region3
    $region8: #{tpu_custom_call.1} parent=1 // loop_exit
      _
    %2710 = vsyncpa [#allocation5], 1
    %s2711 = scalar_lea.sflag [#allocation5], 1
    %2712 = vsyncpa %s2711, 1
    %2713 = vsyncpa [#allocation6], 1
    %s2714 = scalar_lea.sflag [#allocation6], 1
    %2715 = vsyncpa %s2714, 1

</llo_original>
